<compile_context>
chip_gen: v7x
topology: tpu7x:2x2x1
jax: 0.10.0
libtpu: 0.0.40
codegen_flags: <defaults>
</compile_context>

<pallas_src>
import functools

import jax
import jax.numpy as jnp
from jax.experimental import pallas as pl
from jax.experimental.pallas import tpu as pltpu


def _round_up(v, m):
    return ((v + m - 1) // m) * m


# ----------------------------- B-spline helpers -----------------------------

def _make_knots(grid_size, spline_order, grid_range):
    lo, hi = float(grid_range[0]), float(grid_range[1])
    h = (hi - lo) / grid_size
    knots = tuple(lo + (i - spline_order) * h
                  for i in range(grid_size + 2 * spline_order + 1))
    return knots, h


def _bspline_bases(x, knots, h, spline_order):
    """Cox-de Boor recursion with uniform (python-float) knots.

    Level 0 is a single `(x >= knot_j)` comparison ladder; indicator bases are
    adjacent differences (about half the VPU ops of (>= & <) + where).  All
    level-p denominators equal p*h, so divisions become multiplies by
    precomputed reciprocals and x*inv is hoisted once per level.
    Returns grid_size + spline_order arrays shaped like `x` (float32).
    """
    cmp = [(x >= k).astype(jnp.float32) for k in knots]
    bases = [cmp[j] - cmp[j + 1] for j in range(len(knots) - 1)]
    for p in range(1, spline_order + 1):
        inv = 1.0 / (p * h)                 # uniform knots: every denom == p*h
        xi = x * inv                        # hoisted once per level
        new = []
        for j in range(len(bases) - 1):
            a = knots[j] * inv              # python-float constants
            b = knots[j + p + 1] * inv
            new.append((xi - a) * bases[j] + (b - xi) * bases[j + 1])
        bases = new
    return bases


# ------------------------------- Pallas kernel -------------------------------

def _conv_sep_kan_layer_kernel(x_ref, dw_ref, pw_ref, o_ref, *,
                               kernel_size, tile_n, knots, h, spline_order):
    """One ConvSepKANLayer on one (batch, spatial-tile), channels-first.

    x_ref : (1, 1, Cp_in, Tn_ext)        halo-extended input tile, f32
    dw_ref: (NB+1, K, Cp_in, 1)          depthwise weights [base; splines], f32
    pw_ref: (Cp_out, (NB+1)*Cp_in)       pre-packed pointwise weights, bf16
    o_ref : (1, Cp_out, Tn)
    """
    K = kernel_size
    x = x_ref[0, 0]                                      # (Cp_in, Tn_ext) f32
    tn_ext = x.shape[-1]

    # ---- features of the halo-extended tile, computed ONCE per element -----
    s1 = jax.nn.silu(x)
    b1 = _bspline_bases(x, knots, h, spline_order)       # NB x (Cp_in, Tn_ext)
    nb = len(b1)
    dw = dw_ref[...]                                     # (NB+1, K, Cp_in, 1)

    # ---- stage 1: depthwise KAN conv, scale-then-roll (K-1 XLU rolls) ------
    y = None
    for k in range(K):                                   # K small & static
        t = s1 * dw[0, k]                                # base / residual path
        for j in range(nb):
            t = t + b1[j] * dw[1 + j, k]
        if k:                                            # want rolled[p] = t[p+k]
            t = pltpu.roll(t, tn_ext - k, axis=1)
        y = t if y is None else y + t
    y = y[:, :tile_n]                                    # drop halo (128-aligned)

    # ---- stage 2: pointwise KAN mixing as ONE lane-dense MXU matmul --------
    s2 = jax.nn.silu(y)
    b2 = _bspline_bases(y, knots, h, spline_order)
    feats = jnp.concatenate([s2] + b2, axis=0).astype(jnp.bfloat16)
    acc = jnp.dot(pw_ref[...], feats, preferred_element_type=jnp.float32)
    o_ref[0] = acc.astype(o_ref.dtype)


# ------------------------------- layer wrapper -------------------------------

def conv_sep_kan_layer(x, params, *, kernel_size, grid_size, spline_order,
                       grid_range, tile_n=256):
    """x: (B, Cin, N) float32 -> (B, Cout, N) float32 (channels-first)."""
    B, Cin, N = x.shape
    K = kernel_size
    assert K % 2 == 1, "odd kernel size assumed ('same' padding)"
    assert K <= 128, "conv halo must fit inside one 128-lane tile"
    pad = K // 2

    dw, pw = params["dw"], params["pw"]
    Cout = params["out_channels"]
    nb = dw.shape[0] - 1
    Cp_in, Cp_out = dw.shape[2], pw.shape[0]
    assert nb == grid_size + spline_order
    assert pw.shape[1] == (nb + 1) * Cp_in

    # Spatial tiling: Tn output lanes per grid step; extended tiles carry the
    # conv halo rounded up to one 128-lane tile.  Tn=256 keeps the MXU N-dim
    # >= 256 (v6e/v7x) while the live basis maps still fit the vreg file at
    # small Cp_in (no spills); short sequences collapse to a single 128 tile.
    Tn = max(128, _round_up(min(tile_n, _round_up(N, 128)), 128))
    n_t = -(-N // Tn)
    Tn_ext = Tn + 128
    total = n_t * Tn + 128

    # zero "same" padding + channel padding (semantically inert: padded
    # channels carry zero weights) + tail padding.
    xp = jnp.pad(x.astype(jnp.float32),
                 ((0, 0), (0, Cp_in - Cin), (pad, total - N - pad)))
    # Overlapped spatial tiles: halo is built once here, not K times per tap.
    # TODO(synk): fold this gather into the BlockSpec (element offsets) and
    # keep the padded layout across layers to drop the extra HBM round-trips.
    idx = jnp.arange(n_t)[:, None] * Tn + jnp.arange(Tn_ext)[None, :]
    xt = jnp.transpose(xp[:, :, idx], (0, 2, 1, 3))    # (B, n_t, Cp_in, Tn_ext)

    knots, h = _make_knots(grid_size, spline_order, grid_range)
    kernel = functools.partial(
        _conv_sep_kan_layer_kernel, kernel_size=K, tile_n=Tn, knots=knots, h=h,
        spline_order=spline_order)

    out = pl.pallas_call(
        kernel,
        out_shape=jax.ShapeDtypeStruct((B, Cp_out, n_t * Tn), jnp.float32),
        grid_spec=pltpu.PrefetchScalarGridSpec(
            num_scalar_prefetch=0,
            grid=(B, n_t),
            in_specs=[
                pl.BlockSpec((1, 1, Cp_in, Tn_ext), lambda b, t: (b, t, 0, 0)),
                pl.BlockSpec((nb + 1, K, Cp_in, 1), lambda b, t: (0, 0, 0, 0)),
                pl.BlockSpec((Cp_out, (nb + 1) * Cp_in), lambda b, t: (0, 0)),
            ],
            out_specs=pl.BlockSpec((1, Cp_out, Tn), lambda b, t: (b, 0, t)),
        ),
        compiler_params=pltpu.CompilerParams(
            dimension_semantics=("parallel", "parallel"),
            vmem_limit_bytes=32 * 1024 * 1024),
    )(xt, dw, pw)

    # drop channel / spatial padding -> (B, Cout, N), still channels-first.
    return out[:, :Cout, :N]


# ------------------------------- module wrapper -------------------------------

class ConvSepKAN:
    """JAX/Pallas mirror of the PyTorch ConvSepKAN module (stack of layers)."""

    def __init__(self, in_dims, out_dims, kernel_sizes, grid_size, spline_order,
                 residual_std, grid_range, key):
        self.kernel_sizes = tuple(kernel_sizes)
        self.grid_size = grid_size
        self.spline_order = spline_order
        self.grid_range = grid_range
        nb = grid_size + spline_order
        self.params = []
        for cin, cout, ks in zip(in_dims, out_dims, kernel_sizes):
            cp_in, cp_out = _round_up(cin, 8), _round_up(cout, 8)
            key, k1, k2, k3, k4 = jax.random.split(key, 5)
            dw_base = residual_std * jax.random.normal(k1, (ks, cin), jnp.float32)
            dw_spline = 0.1 * jax.random.normal(k2, (nb, ks, cin), jnp.float32)
            pw_base = residual_std * jax.random.normal(k3, (cout, cin), jnp.float32)
            pw_spline = 0.1 * jax.random.normal(k4, (cout, cin, nb), jnp.float32)
            # depthwise weights packed (NB+1, K, Cp_in, 1):
            #   row 0   <-> silu(x_c)  (base / residual path, std = residual_std)
            #   row 1+j <-> B_j(x_c)   (spline path)
            dw = jnp.zeros((nb + 1, ks, cp_in, 1), jnp.float32)
            dw = dw.at[0, :, :cin, 0].set(dw_base)
            dw = dw.at[1:, :, :cin, 0].set(dw_spline)
            # pointwise weights pre-packed (Cp_out, (NB+1)*Cp_in) in bf16;
            # column layout = [silu grp | B_0 grp | ... | B_{nb-1} grp], each
            # of width Cp_in -- matches the in-kernel feature concatenation.
            pw = jnp.zeros((nb + 1, cp_out, cp_in), jnp.float32)
            pw = pw.at[0, :cout, :cin].set(pw_base)
            pw = pw.at[1:, :cout, :cin].set(jnp.transpose(pw_spline, (2, 0, 1)))
            pw_packed = jnp.transpose(pw, (1, 0, 2)).reshape(
                cp_out, (nb + 1) * cp_in).astype(jnp.bfloat16)
            self.params.append({"dw": dw, "pw": pw_packed, "out_channels": cout})

    def __call__(self, x):
        for p, ks in zip(self.params, self.kernel_sizes):
            x = conv_sep_kan_layer(
                x, p, kernel_size=ks, grid_size=self.grid_size,
                spline_order=self.spline_order, grid_range=self.grid_range)
        return x


# ------------------------ pure-JAX reference (sanity) ------------------------

def _reference_layer(x, params, K, grid_size, spline_order, grid_range):
    B, Cin, N = x.shape
    pad = K // 2
    dw, pw = params["dw"], params["pw"]
    Cout = params["out_channels"]
    Cp_in = dw.shape[2]
    nb = dw.shape[0] - 1
    knots, h = _make_knots(grid_size, spline_order, grid_range)
    xp = jnp.pad(x.astype(jnp.float32), ((0, 0), (0, Cp_in - Cin), (pad, pad)))
    s1 = jax.nn.silu(xp)
    b1 = _bspline_bases(xp, knots, h, spline_order)
    y = jnp.zeros((B, Cp_in, N), jnp.float32)
    for k in range(K):
        y = y + s1[:, :, k:k + N] * dw[0, k, :, 0][None, :, None]
        for j in range(nb):
            y = y + b1[j][:, :, k:k + N] * dw[1 + j, k, :, 0][None, :, None]
    s2 = jax.nn.silu(y)
    b2 = _bspline_bases(y, knots, h, spline_order)
    feats = jnp.concatenate([s2] + b2, axis=1)       # (B, (NB+1)*Cp_in, N)
    # same bf16 rounding as the kernel's MXU boundary (products exact in f32)
    out = jnp.einsum("oc,bcn->bon",
                     pw.astype(jnp.float32),
                     feats.astype(jnp.bfloat16).astype(jnp.float32))
    return out[:, :Cout, :]


def _reference_forward(x, model):
    for p, ks in zip(model.params, model.kernel_sizes):
        x = _reference_layer(x, p, ks, model.grid_size, model.spline_order,
                             model.grid_range)
    return x


# ----------------------------------- main -------------------------------------

if __name__ == "__main__":
    key = jax.random.PRNGKey(0)
    kx, kp = jax.random.split(key)

    B, C, N = 2, 4, 64                         # input features B x C x N
    x = jax.random.normal(kx, (B, C, N), jnp.float32)

    model = ConvSepKAN(
        in_dims=(4, 8), out_dims=(8, 4), kernel_sizes=(3, 3),
        grid_size=5, spline_order=3, residual_std=0.1,
        grid_range=(-1.0, 1.0), key=kp,
    )

    y = jax.jit(model.__call__)(x)
    jax.block_until_ready(y)
    assert y.shape == (B, 4, N), y.shape
    assert bool(jnp.all(jnp.isfinite(y)))

    y_ref = _reference_forward(x, model)
    err = float(jnp.max(jnp.abs(y - y_ref)))
    assert err < 1e-2, f"max abs diff vs pure-JAX reference: {err}"

    print("KERNEL_OK")
</pallas_src>

<mosaic_0001>
module attributes {stable_mosaic.version = 11 : i64} {
  func.func @_conv_sep_kan_layer_kernel(%arg0: i32, %arg1: i32, %arg2: memref<1x1x8x256xf32, #tpu.memory_space<vmem>>, %arg3: memref<9x3x8x1xf32, #tpu.memory_space<vmem>>, %arg4: memref<8x72xbf16, #tpu.memory_space<vmem>>, %arg5: memref<1x8x128xf32, #tpu.memory_space<vmem>>) attributes {dimension_semantics = [#tpu.dimension_semantics<parallel>, #tpu.dimension_semantics<parallel>], iteration_bounds = array<i64: 2, 1>, scalar_prefetch = 0 : i64, scratch_operands = 0 : i64, tpu.core_type = #tpu.core_type<tc>, window_params = [{transform_indices = @transform_0, window_bounds = array<i64: 1, 1, 8, 256>}, {pipeline_mode = #tpu.pipeline_mode<synchronous>, transform_indices = @transform_1, window_bounds = array<i64: 9, 3, 8, 1>}, {pipeline_mode = #tpu.pipeline_mode<synchronous>, transform_indices = @transform_2, window_bounds = array<i64: 8, 72>}, {transform_indices = @transform_3, window_bounds = array<i64: 1, 8, 128>}]} {
    %c0 = arith.constant 0 : index
    %c0_0 = arith.constant 0 : index
    %c0_1 = arith.constant 0 : index
    %c0_2 = arith.constant 0 : index
    %0 = vector.load %arg2[%c0, %c0_0, %c0_1, %c0_2] : memref<1x1x8x256xf32, #tpu.memory_space<vmem>>, vector<1x1x8x256xf32>
    %1 = vector.shape_cast %0 : vector<1x1x8x256xf32> to vector<8x256xf32>
    %2 = arith.negf %1 : vector<8x256xf32>
    %3 = math.exp %2 : vector<8x256xf32>
    %cst = arith.constant 1.000000e+00 : f32
    %4 = vector.broadcast %cst : f32 to vector<8x256xf32>
    %5 = arith.addf %4, %3 : vector<8x256xf32>
    %6 = arith.divf %4, %5 : vector<8x256xf32>
    %7 = arith.mulf %1, %6 : vector<8x256xf32>
    %cst_3 = arith.constant -2.200000e+00 : f32
    %8 = vector.broadcast %cst_3 : f32 to vector<8x256xf32>
    %9 = arith.cmpf oge, %1, %8 : vector<8x256xf32>
    %10 = arith.extui %9 : vector<8x256xi1> to vector<8x256xi32>
    %11 = arith.sitofp %10 : vector<8x256xi32> to vector<8x256xf32>
    %cst_4 = arith.constant -1.800000e+00 : f32
    %12 = vector.broadcast %cst_4 : f32 to vector<8x256xf32>
    %13 = arith.cmpf oge, %1, %12 : vector<8x256xf32>
    %14 = arith.extui %13 : vector<8x256xi1> to vector<8x256xi32>
    %15 = arith.sitofp %14 : vector<8x256xi32> to vector<8x256xf32>
    %cst_5 = arith.constant -1.400000e+00 : f32
    %16 = vector.broadcast %cst_5 : f32 to vector<8x256xf32>
    %17 = arith.cmpf oge, %1, %16 : vector<8x256xf32>
    %18 = arith.extui %17 : vector<8x256xi1> to vector<8x256xi32>
    %19 = arith.sitofp %18 : vector<8x256xi32> to vector<8x256xf32>
    %cst_6 = arith.constant -1.000000e+00 : f32
    %20 = vector.broadcast %cst_6 : f32 to vector<8x256xf32>
    %21 = arith.cmpf oge, %1, %20 : vector<8x256xf32>
    %22 = arith.extui %21 : vector<8x256xi1> to vector<8x256xi32>
    %23 = arith.sitofp %22 : vector<8x256xi32> to vector<8x256xf32>
    %cst_7 = arith.constant -6.000000e-01 : f32
    %24 = vector.broadcast %cst_7 : f32 to vector<8x256xf32>
    %25 = arith.cmpf oge, %1, %24 : vector<8x256xf32>
    %26 = arith.extui %25 : vector<8x256xi1> to vector<8x256xi32>
    %27 = arith.sitofp %26 : vector<8x256xi32> to vector<8x256xf32>
    %cst_8 = arith.constant -2.000000e-01 : f32
    %28 = vector.broadcast %cst_8 : f32 to vector<8x256xf32>
    %29 = arith.cmpf oge, %1, %28 : vector<8x256xf32>
    %30 = arith.extui %29 : vector<8x256xi1> to vector<8x256xi32>
    %31 = arith.sitofp %30 : vector<8x256xi32> to vector<8x256xf32>
    %cst_9 = arith.constant 2.000000e-01 : f32
    %32 = vector.broadcast %cst_9 : f32 to vector<8x256xf32>
    %33 = arith.cmpf oge, %1, %32 : vector<8x256xf32>
    %34 = arith.extui %33 : vector<8x256xi1> to vector<8x256xi32>
    %35 = arith.sitofp %34 : vector<8x256xi32> to vector<8x256xf32>
    %cst_10 = arith.constant 6.000000e-01 : f32
    %36 = vector.broadcast %cst_10 : f32 to vector<8x256xf32>
    %37 = arith.cmpf oge, %1, %36 : vector<8x256xf32>
    %38 = arith.extui %37 : vector<8x256xi1> to vector<8x256xi32>
    %39 = arith.sitofp %38 : vector<8x256xi32> to vector<8x256xf32>
    %cst_11 = arith.constant 1.000000e+00 : f32
    %40 = vector.broadcast %cst_11 : f32 to vector<8x256xf32>
    %41 = arith.cmpf oge, %1, %40 : vector<8x256xf32>
    %42 = arith.extui %41 : vector<8x256xi1> to vector<8x256xi32>
    %43 = arith.sitofp %42 : vector<8x256xi32> to vector<8x256xf32>
    %cst_12 = arith.constant 1.400000e+00 : f32
    %44 = vector.broadcast %cst_12 : f32 to vector<8x256xf32>
    %45 = arith.cmpf oge, %1, %44 : vector<8x256xf32>
    %46 = arith.extui %45 : vector<8x256xi1> to vector<8x256xi32>
    %47 = arith.sitofp %46 : vector<8x256xi32> to vector<8x256xf32>
    %cst_13 = arith.constant 1.800000e+00 : f32
    %48 = vector.broadcast %cst_13 : f32 to vector<8x256xf32>
    %49 = arith.cmpf oge, %1, %48 : vector<8x256xf32>
    %50 = arith.extui %49 : vector<8x256xi1> to vector<8x256xi32>
    %51 = arith.sitofp %50 : vector<8x256xi32> to vector<8x256xf32>
    %cst_14 = arith.constant 2.200000e+00 : f32
    %52 = vector.broadcast %cst_14 : f32 to vector<8x256xf32>
    %53 = arith.cmpf oge, %1, %52 : vector<8x256xf32>
    %54 = arith.extui %53 : vector<8x256xi1> to vector<8x256xi32>
    %55 = arith.sitofp %54 : vector<8x256xi32> to vector<8x256xf32>
    %56 = arith.subf %11, %15 : vector<8x256xf32>
    %57 = arith.subf %15, %19 : vector<8x256xf32>
    %58 = arith.subf %19, %23 : vector<8x256xf32>
    %59 = arith.subf %23, %27 : vector<8x256xf32>
    %60 = arith.subf %27, %31 : vector<8x256xf32>
    %61 = arith.subf %31, %35 : vector<8x256xf32>
    %62 = arith.subf %35, %39 : vector<8x256xf32>
    %63 = arith.subf %39, %43 : vector<8x256xf32>
    %64 = arith.subf %43, %47 : vector<8x256xf32>
    %65 = arith.subf %47, %51 : vector<8x256xf32>
    %66 = arith.subf %51, %55 : vector<8x256xf32>
    %cst_15 = arith.constant 2.500000e+00 : f32
    %67 = vector.broadcast %cst_15 : f32 to vector<8x256xf32>
    %68 = arith.mulf %1, %67 : vector<8x256xf32>
    %cst_16 = arith.constant -5.500000e+00 : f32
    %69 = vector.broadcast %cst_16 : f32 to vector<8x256xf32>
    %70 = arith.subf %68, %69 : vector<8x256xf32>
    %71 = arith.mulf %70, %56 : vector<8x256xf32>
    %cst_17 = arith.constant -3.500000e+00 : f32
    %72 = vector.broadcast %cst_17 : f32 to vector<8x256xf32>
    %73 = arith.subf %72, %68 : vector<8x256xf32>
    %74 = arith.mulf %73, %57 : vector<8x256xf32>
    %75 = arith.addf %71, %74 : vector<8x256xf32>
    %cst_18 = arith.constant -4.500000e+00 : f32
    %76 = vector.broadcast %cst_18 : f32 to vector<8x256xf32>
    %77 = arith.subf %68, %76 : vector<8x256xf32>
    %78 = arith.mulf %77, %57 : vector<8x256xf32>
    %cst_19 = arith.constant -2.500000e+00 : f32
    %79 = vector.broadcast %cst_19 : f32 to vector<8x256xf32>
    %80 = arith.subf %79, %68 : vector<8x256xf32>
    %81 = arith.mulf %80, %58 : vector<8x256xf32>
    %82 = arith.addf %78, %81 : vector<8x256xf32>
    %cst_20 = arith.constant -3.500000e+00 : f32
    %83 = vector.broadcast %cst_20 : f32 to vector<8x256xf32>
    %84 = arith.subf %68, %83 : vector<8x256xf32>
    %85 = arith.mulf %84, %58 : vector<8x256xf32>
    %cst_21 = arith.constant -1.500000e+00 : f32
    %86 = vector.broadcast %cst_21 : f32 to vector<8x256xf32>
    %87 = arith.subf %86, %68 : vector<8x256xf32>
    %88 = arith.mulf %87, %59 : vector<8x256xf32>
    %89 = arith.addf %85, %88 : vector<8x256xf32>
    %cst_22 = arith.constant -2.500000e+00 : f32
    %90 = vector.broadcast %cst_22 : f32 to vector<8x256xf32>
    %91 = arith.subf %68, %90 : vector<8x256xf32>
    %92 = arith.mulf %91, %59 : vector<8x256xf32>
    %cst_23 = arith.constant -5.000000e-01 : f32
    %93 = vector.broadcast %cst_23 : f32 to vector<8x256xf32>
    %94 = arith.subf %93, %68 : vector<8x256xf32>
    %95 = arith.mulf %94, %60 : vector<8x256xf32>
    %96 = arith.addf %92, %95 : vector<8x256xf32>
    %cst_24 = arith.constant -1.500000e+00 : f32
    %97 = vector.broadcast %cst_24 : f32 to vector<8x256xf32>
    %98 = arith.subf %68, %97 : vector<8x256xf32>
    %99 = arith.mulf %98, %60 : vector<8x256xf32>
    %cst_25 = arith.constant 5.000000e-01 : f32
    %100 = vector.broadcast %cst_25 : f32 to vector<8x256xf32>
    %101 = arith.subf %100, %68 : vector<8x256xf32>
    %102 = arith.mulf %101, %61 : vector<8x256xf32>
    %103 = arith.addf %99, %102 : vector<8x256xf32>
    %cst_26 = arith.constant -5.000000e-01 : f32
    %104 = vector.broadcast %cst_26 : f32 to vector<8x256xf32>
    %105 = arith.subf %68, %104 : vector<8x256xf32>
    %106 = arith.mulf %105, %61 : vector<8x256xf32>
    %cst_27 = arith.constant 1.500000e+00 : f32
    %107 = vector.broadcast %cst_27 : f32 to vector<8x256xf32>
    %108 = arith.subf %107, %68 : vector<8x256xf32>
    %109 = arith.mulf %108, %62 : vector<8x256xf32>
    %110 = arith.addf %106, %109 : vector<8x256xf32>
    %cst_28 = arith.constant 5.000000e-01 : f32
    %111 = vector.broadcast %cst_28 : f32 to vector<8x256xf32>
    %112 = arith.subf %68, %111 : vector<8x256xf32>
    %113 = arith.mulf %112, %62 : vector<8x256xf32>
    %cst_29 = arith.constant 2.500000e+00 : f32
    %114 = vector.broadcast %cst_29 : f32 to vector<8x256xf32>
    %115 = arith.subf %114, %68 : vector<8x256xf32>
    %116 = arith.mulf %115, %63 : vector<8x256xf32>
    %117 = arith.addf %113, %116 : vector<8x256xf32>
    %cst_30 = arith.constant 1.500000e+00 : f32
    %118 = vector.broadcast %cst_30 : f32 to vector<8x256xf32>
    %119 = arith.subf %68, %118 : vector<8x256xf32>
    %120 = arith.mulf %119, %63 : vector<8x256xf32>
    %cst_31 = arith.constant 3.500000e+00 : f32
    %121 = vector.broadcast %cst_31 : f32 to vector<8x256xf32>
    %122 = arith.subf %121, %68 : vector<8x256xf32>
    %123 = arith.mulf %122, %64 : vector<8x256xf32>
    %124 = arith.addf %120, %123 : vector<8x256xf32>
    %cst_32 = arith.constant 2.500000e+00 : f32
    %125 = vector.broadcast %cst_32 : f32 to vector<8x256xf32>
    %126 = arith.subf %68, %125 : vector<8x256xf32>
    %127 = arith.mulf %126, %64 : vector<8x256xf32>
    %cst_33 = arith.constant 4.500000e+00 : f32
    %128 = vector.broadcast %cst_33 : f32 to vector<8x256xf32>
    %129 = arith.subf %128, %68 : vector<8x256xf32>
    %130 = arith.mulf %129, %65 : vector<8x256xf32>
    %131 = arith.addf %127, %130 : vector<8x256xf32>
    %cst_34 = arith.constant 3.500000e+00 : f32
    %132 = vector.broadcast %cst_34 : f32 to vector<8x256xf32>
    %133 = arith.subf %68, %132 : vector<8x256xf32>
    %134 = arith.mulf %133, %65 : vector<8x256xf32>
    %cst_35 = arith.constant 5.500000e+00 : f32
    %135 = vector.broadcast %cst_35 : f32 to vector<8x256xf32>
    %136 = arith.subf %135, %68 : vector<8x256xf32>
    %137 = arith.mulf %136, %66 : vector<8x256xf32>
    %138 = arith.addf %134, %137 : vector<8x256xf32>
    %cst_36 = arith.constant 1.250000e+00 : f32
    %139 = vector.broadcast %cst_36 : f32 to vector<8x256xf32>
    %140 = arith.mulf %1, %139 : vector<8x256xf32>
    %cst_37 = arith.constant -2.750000e+00 : f32
    %141 = vector.broadcast %cst_37 : f32 to vector<8x256xf32>
    %142 = arith.subf %140, %141 : vector<8x256xf32>
    %143 = arith.mulf %142, %75 : vector<8x256xf32>
    %cst_38 = arith.constant -1.250000e+00 : f32
    %144 = vector.broadcast %cst_38 : f32 to vector<8x256xf32>
    %145 = arith.subf %144, %140 : vector<8x256xf32>
    %146 = arith.mulf %145, %82 : vector<8x256xf32>
    %147 = arith.addf %143, %146 : vector<8x256xf32>
    %cst_39 = arith.constant -2.250000e+00 : f32
    %148 = vector.broadcast %cst_39 : f32 to vector<8x256xf32>
    %149 = arith.subf %140, %148 : vector<8x256xf32>
    %150 = arith.mulf %149, %82 : vector<8x256xf32>
    %cst_40 = arith.constant -7.500000e-01 : f32
    %151 = vector.broadcast %cst_40 : f32 to vector<8x256xf32>
    %152 = arith.subf %151, %140 : vector<8x256xf32>
    %153 = arith.mulf %152, %89 : vector<8x256xf32>
    %154 = arith.addf %150, %153 : vector<8x256xf32>
    %cst_41 = arith.constant -1.750000e+00 : f32
    %155 = vector.broadcast %cst_41 : f32 to vector<8x256xf32>
    %156 = arith.subf %140, %155 : vector<8x256xf32>
    %157 = arith.mulf %156, %89 : vector<8x256xf32>
    %cst_42 = arith.constant -2.500000e-01 : f32
    %158 = vector.broadcast %cst_42 : f32 to vector<8x256xf32>
    %159 = arith.subf %158, %140 : vector<8x256xf32>
    %160 = arith.mulf %159, %96 : vector<8x256xf32>
    %161 = arith.addf %157, %160 : vector<8x256xf32>
    %cst_43 = arith.constant -1.250000e+00 : f32
    %162 = vector.broadcast %cst_43 : f32 to vector<8x256xf32>
    %163 = arith.subf %140, %162 : vector<8x256xf32>
    %164 = arith.mulf %163, %96 : vector<8x256xf32>
    %cst_44 = arith.constant 2.500000e-01 : f32
    %165 = vector.broadcast %cst_44 : f32 to vector<8x256xf32>
    %166 = arith.subf %165, %140 : vector<8x256xf32>
    %167 = arith.mulf %166, %103 : vector<8x256xf32>
    %168 = arith.addf %164, %167 : vector<8x256xf32>
    %cst_45 = arith.constant -7.500000e-01 : f32
    %169 = vector.broadcast %cst_45 : f32 to vector<8x256xf32>
    %170 = arith.subf %140, %169 : vector<8x256xf32>
    %171 = arith.mulf %170, %103 : vector<8x256xf32>
    %cst_46 = arith.constant 7.500000e-01 : f32
    %172 = vector.broadcast %cst_46 : f32 to vector<8x256xf32>
    %173 = arith.subf %172, %140 : vector<8x256xf32>
    %174 = arith.mulf %173, %110 : vector<8x256xf32>
    %175 = arith.addf %171, %174 : vector<8x256xf32>
    %cst_47 = arith.constant -2.500000e-01 : f32
    %176 = vector.broadcast %cst_47 : f32 to vector<8x256xf32>
    %177 = arith.subf %140, %176 : vector<8x256xf32>
    %178 = arith.mulf %177, %110 : vector<8x256xf32>
    %cst_48 = arith.constant 1.250000e+00 : f32
    %179 = vector.broadcast %cst_48 : f32 to vector<8x256xf32>
    %180 = arith.subf %179, %140 : vector<8x256xf32>
    %181 = arith.mulf %180, %117 : vector<8x256xf32>
    %182 = arith.addf %178, %181 : vector<8x256xf32>
    %cst_49 = arith.constant 2.500000e-01 : f32
    %183 = vector.broadcast %cst_49 : f32 to vector<8x256xf32>
    %184 = arith.subf %140, %183 : vector<8x256xf32>
    %185 = arith.mulf %184, %117 : vector<8x256xf32>
    %cst_50 = arith.constant 1.750000e+00 : f32
    %186 = vector.broadcast %cst_50 : f32 to vector<8x256xf32>
    %187 = arith.subf %186, %140 : vector<8x256xf32>
    %188 = arith.mulf %187, %124 : vector<8x256xf32>
    %189 = arith.addf %185, %188 : vector<8x256xf32>
    %cst_51 = arith.constant 7.500000e-01 : f32
    %190 = vector.broadcast %cst_51 : f32 to vector<8x256xf32>
    %191 = arith.subf %140, %190 : vector<8x256xf32>
    %192 = arith.mulf %191, %124 : vector<8x256xf32>
    %cst_52 = arith.constant 2.250000e+00 : f32
    %193 = vector.broadcast %cst_52 : f32 to vector<8x256xf32>
    %194 = arith.subf %193, %140 : vector<8x256xf32>
    %195 = arith.mulf %194, %131 : vector<8x256xf32>
    %196 = arith.addf %192, %195 : vector<8x256xf32>
    %cst_53 = arith.constant 1.250000e+00 : f32
    %197 = vector.broadcast %cst_53 : f32 to vector<8x256xf32>
    %198 = arith.subf %140, %197 : vector<8x256xf32>
    %199 = arith.mulf %198, %131 : vector<8x256xf32>
    %cst_54 = arith.constant 2.750000e+00 : f32
    %200 = vector.broadcast %cst_54 : f32 to vector<8x256xf32>
    %201 = arith.subf %200, %140 : vector<8x256xf32>
    %202 = arith.mulf %201, %138 : vector<8x256xf32>
    %203 = arith.addf %199, %202 : vector<8x256xf32>
    %cst_55 = arith.constant 0.833333313 : f32
    %204 = vector.broadcast %cst_55 : f32 to vector<8x256xf32>
    %205 = arith.mulf %1, %204 : vector<8x256xf32>
    %cst_56 = arith.constant -1.83333337 : f32
    %206 = vector.broadcast %cst_56 : f32 to vector<8x256xf32>
    %207 = arith.subf %205, %206 : vector<8x256xf32>
    %208 = arith.mulf %207, %147 : vector<8x256xf32>
    %cst_57 = arith.constant -5.000000e-01 : f32
    %209 = vector.broadcast %cst_57 : f32 to vector<8x256xf32>
    %210 = arith.subf %209, %205 : vector<8x256xf32>
    %211 = arith.mulf %210, %154 : vector<8x256xf32>
    %212 = arith.addf %208, %211 : vector<8x256xf32>
    %cst_58 = arith.constant -1.500000e+00 : f32
    %213 = vector.broadcast %cst_58 : f32 to vector<8x256xf32>
    %214 = arith.subf %205, %213 : vector<8x256xf32>
    %215 = arith.mulf %214, %154 : vector<8x256xf32>
    %cst_59 = arith.constant -0.166666672 : f32
    %216 = vector.broadcast %cst_59 : f32 to vector<8x256xf32>
    %217 = arith.subf %216, %205 : vector<8x256xf32>
    %218 = arith.mulf %217, %161 : vector<8x256xf32>
    %219 = arith.addf %215, %218 : vector<8x256xf32>
    %cst_60 = arith.constant -1.16666663 : f32
    %220 = vector.broadcast %cst_60 : f32 to vector<8x256xf32>
    %221 = arith.subf %205, %220 : vector<8x256xf32>
    %222 = arith.mulf %221, %161 : vector<8x256xf32>
    %cst_61 = arith.constant 0.166666672 : f32
    %223 = vector.broadcast %cst_61 : f32 to vector<8x256xf32>
    %224 = arith.subf %223, %205 : vector<8x256xf32>
    %225 = arith.mulf %224, %168 : vector<8x256xf32>
    %226 = arith.addf %222, %225 : vector<8x256xf32>
    %cst_62 = arith.constant -0.833333313 : f32
    %227 = vector.broadcast %cst_62 : f32 to vector<8x256xf32>
    %228 = arith.subf %205, %227 : vector<8x256xf32>
    %229 = arith.mulf %228, %168 : vector<8x256xf32>
    %cst_63 = arith.constant 5.000000e-01 : f32
    %230 = vector.broadcast %cst_63 : f32 to vector<8x256xf32>
    %231 = arith.subf %230, %205 : vector<8x256xf32>
    %232 = arith.mulf %231, %175 : vector<8x256xf32>
    %233 = arith.addf %229, %232 : vector<8x256xf32>
    %cst_64 = arith.constant -5.000000e-01 : f32
    %234 = vector.broadcast %cst_64 : f32 to vector<8x256xf32>
    %235 = arith.subf %205, %234 : vector<8x256xf32>
    %236 = arith.mulf %235, %175 : vector<8x256xf32>
    %cst_65 = arith.constant 0.833333313 : f32
    %237 = vector.broadcast %cst_65 : f32 to vector<8x256xf32>
    %238 = arith.subf %237, %205 : vector<8x256xf32>
    %239 = arith.mulf %238, %182 : vector<8x256xf32>
    %240 = arith.addf %236, %239 : vector<8x256xf32>
    %cst_66 = arith.constant -0.166666672 : f32
    %241 = vector.broadcast %cst_66 : f32 to vector<8x256xf32>
    %242 = arith.subf %205, %241 : vector<8x256xf32>
    %243 = arith.mulf %242, %182 : vector<8x256xf32>
    %cst_67 = arith.constant 1.16666663 : f32
    %244 = vector.broadcast %cst_67 : f32 to vector<8x256xf32>
    %245 = arith.subf %244, %205 : vector<8x256xf32>
    %246 = arith.mulf %245, %189 : vector<8x256xf32>
    %247 = arith.addf %243, %246 : vector<8x256xf32>
    %cst_68 = arith.constant 0.166666672 : f32
    %248 = vector.broadcast %cst_68 : f32 to vector<8x256xf32>
    %249 = arith.subf %205, %248 : vector<8x256xf32>
    %250 = arith.mulf %249, %189 : vector<8x256xf32>
    %cst_69 = arith.constant 1.500000e+00 : f32
    %251 = vector.broadcast %cst_69 : f32 to vector<8x256xf32>
    %252 = arith.subf %251, %205 : vector<8x256xf32>
    %253 = arith.mulf %252, %196 : vector<8x256xf32>
    %254 = arith.addf %250, %253 : vector<8x256xf32>
    %cst_70 = arith.constant 5.000000e-01 : f32
    %255 = vector.broadcast %cst_70 : f32 to vector<8x256xf32>
    %256 = arith.subf %205, %255 : vector<8x256xf32>
    %257 = arith.mulf %256, %196 : vector<8x256xf32>
    %cst_71 = arith.constant 1.83333337 : f32
    %258 = vector.broadcast %cst_71 : f32 to vector<8x256xf32>
    %259 = arith.subf %258, %205 : vector<8x256xf32>
    %260 = arith.mulf %259, %203 : vector<8x256xf32>
    %261 = arith.addf %257, %260 : vector<8x256xf32>
    %c0_72 = arith.constant 0 : index
    %c0_73 = arith.constant 0 : index
    %c0_74 = arith.constant 0 : index
    %c0_75 = arith.constant 0 : index
    %262 = vector.load %arg3[%c0_72, %c0_73, %c0_74, %c0_75] : memref<9x3x8x1xf32, #tpu.memory_space<vmem>>, vector<9x3x8x1xf32>
    %263 = vector.extract_strided_slice %262 {offsets = [0, 0, 0, 0], sizes = [1, 1, 8, 1], strides = [1, 1, 1, 1]} : vector<9x3x8x1xf32> to vector<1x1x8x1xf32>
    %264 = vector.shape_cast %263 : vector<1x1x8x1xf32> to vector<8x1xf32>
    %265 = vector.broadcast %264 : vector<8x1xf32> to vector<8x256xf32>
    %266 = arith.mulf %7, %265 : vector<8x256xf32>
    %267 = vector.extract_strided_slice %262 {offsets = [1, 0, 0, 0], sizes = [1, 1, 8, 1], strides = [1, 1, 1, 1]} : vector<9x3x8x1xf32> to vector<1x1x8x1xf32>
    %268 = vector.shape_cast %267 : vector<1x1x8x1xf32> to vector<8x1xf32>
    %269 = vector.broadcast %268 : vector<8x1xf32> to vector<8x256xf32>
    %270 = arith.mulf %212, %269 : vector<8x256xf32>
    %271 = arith.addf %266, %270 : vector<8x256xf32>
    %272 = vector.extract_strided_slice %262 {offsets = [2, 0, 0, 0], sizes = [1, 1, 8, 1], strides = [1, 1, 1, 1]} : vector<9x3x8x1xf32> to vector<1x1x8x1xf32>
    %273 = vector.shape_cast %272 : vector<1x1x8x1xf32> to vector<8x1xf32>
    %274 = vector.broadcast %273 : vector<8x1xf32> to vector<8x256xf32>
    %275 = arith.mulf %219, %274 : vector<8x256xf32>
    %276 = arith.addf %271, %275 : vector<8x256xf32>
    %277 = vector.extract_strided_slice %262 {offsets = [3, 0, 0, 0], sizes = [1, 1, 8, 1], strides = [1, 1, 1, 1]} : vector<9x3x8x1xf32> to vector<1x1x8x1xf32>
    %278 = vector.shape_cast %277 : vector<1x1x8x1xf32> to vector<8x1xf32>
    %279 = vector.broadcast %278 : vector<8x1xf32> to vector<8x256xf32>
    %280 = arith.mulf %226, %279 : vector<8x256xf32>
    %281 = arith.addf %276, %280 : vector<8x256xf32>
    %282 = vector.extract_strided_slice %262 {offsets = [4, 0, 0, 0], sizes = [1, 1, 8, 1], strides = [1, 1, 1, 1]} : vector<9x3x8x1xf32> to vector<1x1x8x1xf32>
    %283 = vector.shape_cast %282 : vector<1x1x8x1xf32> to vector<8x1xf32>
    %284 = vector.broadcast %283 : vector<8x1xf32> to vector<8x256xf32>
    %285 = arith.mulf %233, %284 : vector<8x256xf32>
    %286 = arith.addf %281, %285 : vector<8x256xf32>
    %287 = vector.extract_strided_slice %262 {offsets = [5, 0, 0, 0], sizes = [1, 1, 8, 1], strides = [1, 1, 1, 1]} : vector<9x3x8x1xf32> to vector<1x1x8x1xf32>
    %288 = vector.shape_cast %287 : vector<1x1x8x1xf32> to vector<8x1xf32>
    %289 = vector.broadcast %288 : vector<8x1xf32> to vector<8x256xf32>
    %290 = arith.mulf %240, %289 : vector<8x256xf32>
    %291 = arith.addf %286, %290 : vector<8x256xf32>
    %292 = vector.extract_strided_slice %262 {offsets = [6, 0, 0, 0], sizes = [1, 1, 8, 1], strides = [1, 1, 1, 1]} : vector<9x3x8x1xf32> to vector<1x1x8x1xf32>
    %293 = vector.shape_cast %292 : vector<1x1x8x1xf32> to vector<8x1xf32>
    %294 = vector.broadcast %293 : vector<8x1xf32> to vector<8x256xf32>
    %295 = arith.mulf %247, %294 : vector<8x256xf32>
    %296 = arith.addf %291, %295 : vector<8x256xf32>
    %297 = vector.extract_strided_slice %262 {offsets = [7, 0, 0, 0], sizes = [1, 1, 8, 1], strides = [1, 1, 1, 1]} : vector<9x3x8x1xf32> to vector<1x1x8x1xf32>
    %298 = vector.shape_cast %297 : vector<1x1x8x1xf32> to vector<8x1xf32>
    %299 = vector.broadcast %298 : vector<8x1xf32> to vector<8x256xf32>
    %300 = arith.mulf %254, %299 : vector<8x256xf32>
    %301 = arith.addf %296, %300 : vector<8x256xf32>
    %302 = vector.extract_strided_slice %262 {offsets = [8, 0, 0, 0], sizes = [1, 1, 8, 1], strides = [1, 1, 1, 1]} : vector<9x3x8x1xf32> to vector<1x1x8x1xf32>
    %303 = vector.shape_cast %302 : vector<1x1x8x1xf32> to vector<8x1xf32>
    %304 = vector.broadcast %303 : vector<8x1xf32> to vector<8x256xf32>
    %305 = arith.mulf %261, %304 : vector<8x256xf32>
    %306 = arith.addf %301, %305 : vector<8x256xf32>
    %307 = vector.extract_strided_slice %262 {offsets = [0, 1, 0, 0], sizes = [1, 1, 8, 1], strides = [1, 1, 1, 1]} : vector<9x3x8x1xf32> to vector<1x1x8x1xf32>
    %308 = vector.shape_cast %307 : vector<1x1x8x1xf32> to vector<8x1xf32>
    %309 = vector.broadcast %308 : vector<8x1xf32> to vector<8x256xf32>
    %310 = arith.mulf %7, %309 : vector<8x256xf32>
    %311 = vector.extract_strided_slice %262 {offsets = [1, 1, 0, 0], sizes = [1, 1, 8, 1], strides = [1, 1, 1, 1]} : vector<9x3x8x1xf32> to vector<1x1x8x1xf32>
    %312 = vector.shape_cast %311 : vector<1x1x8x1xf32> to vector<8x1xf32>
    %313 = vector.broadcast %312 : vector<8x1xf32> to vector<8x256xf32>
    %314 = arith.mulf %212, %313 : vector<8x256xf32>
    %315 = arith.addf %310, %314 : vector<8x256xf32>
    %316 = vector.extract_strided_slice %262 {offsets = [2, 1, 0, 0], sizes = [1, 1, 8, 1], strides = [1, 1, 1, 1]} : vector<9x3x8x1xf32> to vector<1x1x8x1xf32>
    %317 = vector.shape_cast %316 : vector<1x1x8x1xf32> to vector<8x1xf32>
    %318 = vector.broadcast %317 : vector<8x1xf32> to vector<8x256xf32>
    %319 = arith.mulf %219, %318 : vector<8x256xf32>
    %320 = arith.addf %315, %319 : vector<8x256xf32>
    %321 = vector.extract_strided_slice %262 {offsets = [3, 1, 0, 0], sizes = [1, 1, 8, 1], strides = [1, 1, 1, 1]} : vector<9x3x8x1xf32> to vector<1x1x8x1xf32>
    %322 = vector.shape_cast %321 : vector<1x1x8x1xf32> to vector<8x1xf32>
    %323 = vector.broadcast %322 : vector<8x1xf32> to vector<8x256xf32>
    %324 = arith.mulf %226, %323 : vector<8x256xf32>
    %325 = arith.addf %320, %324 : vector<8x256xf32>
    %326 = vector.extract_strided_slice %262 {offsets = [4, 1, 0, 0], sizes = [1, 1, 8, 1], strides = [1, 1, 1, 1]} : vector<9x3x8x1xf32> to vector<1x1x8x1xf32>
    %327 = vector.shape_cast %326 : vector<1x1x8x1xf32> to vector<8x1xf32>
    %328 = vector.broadcast %327 : vector<8x1xf32> to vector<8x256xf32>
    %329 = arith.mulf %233, %328 : vector<8x256xf32>
    %330 = arith.addf %325, %329 : vector<8x256xf32>
    %331 = vector.extract_strided_slice %262 {offsets = [5, 1, 0, 0], sizes = [1, 1, 8, 1], strides = [1, 1, 1, 1]} : vector<9x3x8x1xf32> to vector<1x1x8x1xf32>
    %332 = vector.shape_cast %331 : vector<1x1x8x1xf32> to vector<8x1xf32>
    %333 = vector.broadcast %332 : vector<8x1xf32> to vector<8x256xf32>
    %334 = arith.mulf %240, %333 : vector<8x256xf32>
    %335 = arith.addf %330, %334 : vector<8x256xf32>
    %336 = vector.extract_strided_slice %262 {offsets = [6, 1, 0, 0], sizes = [1, 1, 8, 1], strides = [1, 1, 1, 1]} : vector<9x3x8x1xf32> to vector<1x1x8x1xf32>
    %337 = vector.shape_cast %336 : vector<1x1x8x1xf32> to vector<8x1xf32>
    %338 = vector.broadcast %337 : vector<8x1xf32> to vector<8x256xf32>
    %339 = arith.mulf %247, %338 : vector<8x256xf32>
    %340 = arith.addf %335, %339 : vector<8x256xf32>
    %341 = vector.extract_strided_slice %262 {offsets = [7, 1, 0, 0], sizes = [1, 1, 8, 1], strides = [1, 1, 1, 1]} : vector<9x3x8x1xf32> to vector<1x1x8x1xf32>
    %342 = vector.shape_cast %341 : vector<1x1x8x1xf32> to vector<8x1xf32>
    %343 = vector.broadcast %342 : vector<8x1xf32> to vector<8x256xf32>
    %344 = arith.mulf %254, %343 : vector<8x256xf32>
    %345 = arith.addf %340, %344 : vector<8x256xf32>
    %346 = vector.extract_strided_slice %262 {offsets = [8, 1, 0, 0], sizes = [1, 1, 8, 1], strides = [1, 1, 1, 1]} : vector<9x3x8x1xf32> to vector<1x1x8x1xf32>
    %347 = vector.shape_cast %346 : vector<1x1x8x1xf32> to vector<8x1xf32>
    %348 = vector.broadcast %347 : vector<8x1xf32> to vector<8x256xf32>
    %349 = arith.mulf %261, %348 : vector<8x256xf32>
    %350 = arith.addf %345, %349 : vector<8x256xf32>
    %c255_i32 = arith.constant 255 : i32
    %351 = tpu.dynamic_rotate %350 by %c255_i32 dim 1 : vector<8x256xf32>, i32 -> vector<8x256xf32>
    %352 = arith.addf %306, %351 : vector<8x256xf32>
    %353 = vector.extract_strided_slice %262 {offsets = [0, 2, 0, 0], sizes = [1, 1, 8, 1], strides = [1, 1, 1, 1]} : vector<9x3x8x1xf32> to vector<1x1x8x1xf32>
    %354 = vector.shape_cast %353 : vector<1x1x8x1xf32> to vector<8x1xf32>
    %355 = vector.broadcast %354 : vector<8x1xf32> to vector<8x256xf32>
    %356 = arith.mulf %7, %355 : vector<8x256xf32>
    %357 = vector.extract_strided_slice %262 {offsets = [1, 2, 0, 0], sizes = [1, 1, 8, 1], strides = [1, 1, 1, 1]} : vector<9x3x8x1xf32> to vector<1x1x8x1xf32>
    %358 = vector.shape_cast %357 : vector<1x1x8x1xf32> to vector<8x1xf32>
    %359 = vector.broadcast %358 : vector<8x1xf32> to vector<8x256xf32>
    %360 = arith.mulf %212, %359 : vector<8x256xf32>
    %361 = arith.addf %356, %360 : vector<8x256xf32>
    %362 = vector.extract_strided_slice %262 {offsets = [2, 2, 0, 0], sizes = [1, 1, 8, 1], strides = [1, 1, 1, 1]} : vector<9x3x8x1xf32> to vector<1x1x8x1xf32>
    %363 = vector.shape_cast %362 : vector<1x1x8x1xf32> to vector<8x1xf32>
    %364 = vector.broadcast %363 : vector<8x1xf32> to vector<8x256xf32>
    %365 = arith.mulf %219, %364 : vector<8x256xf32>
    %366 = arith.addf %361, %365 : vector<8x256xf32>
    %367 = vector.extract_strided_slice %262 {offsets = [3, 2, 0, 0], sizes = [1, 1, 8, 1], strides = [1, 1, 1, 1]} : vector<9x3x8x1xf32> to vector<1x1x8x1xf32>
    %368 = vector.shape_cast %367 : vector<1x1x8x1xf32> to vector<8x1xf32>
    %369 = vector.broadcast %368 : vector<8x1xf32> to vector<8x256xf32>
    %370 = arith.mulf %226, %369 : vector<8x256xf32>
    %371 = arith.addf %366, %370 : vector<8x256xf32>
    %372 = vector.extract_strided_slice %262 {offsets = [4, 2, 0, 0], sizes = [1, 1, 8, 1], strides = [1, 1, 1, 1]} : vector<9x3x8x1xf32> to vector<1x1x8x1xf32>
    %373 = vector.shape_cast %372 : vector<1x1x8x1xf32> to vector<8x1xf32>
    %374 = vector.broadcast %373 : vector<8x1xf32> to vector<8x256xf32>
    %375 = arith.mulf %233, %374 : vector<8x256xf32>
    %376 = arith.addf %371, %375 : vector<8x256xf32>
    %377 = vector.extract_strided_slice %262 {offsets = [5, 2, 0, 0], sizes = [1, 1, 8, 1], strides = [1, 1, 1, 1]} : vector<9x3x8x1xf32> to vector<1x1x8x1xf32>
    %378 = vector.shape_cast %377 : vector<1x1x8x1xf32> to vector<8x1xf32>
    %379 = vector.broadcast %378 : vector<8x1xf32> to vector<8x256xf32>
    %380 = arith.mulf %240, %379 : vector<8x256xf32>
    %381 = arith.addf %376, %380 : vector<8x256xf32>
    %382 = vector.extract_strided_slice %262 {offsets = [6, 2, 0, 0], sizes = [1, 1, 8, 1], strides = [1, 1, 1, 1]} : vector<9x3x8x1xf32> to vector<1x1x8x1xf32>
    %383 = vector.shape_cast %382 : vector<1x1x8x1xf32> to vector<8x1xf32>
    %384 = vector.broadcast %383 : vector<8x1xf32> to vector<8x256xf32>
    %385 = arith.mulf %247, %384 : vector<8x256xf32>
    %386 = arith.addf %381, %385 : vector<8x256xf32>
    %387 = vector.extract_strided_slice %262 {offsets = [7, 2, 0, 0], sizes = [1, 1, 8, 1], strides = [1, 1, 1, 1]} : vector<9x3x8x1xf32> to vector<1x1x8x1xf32>
    %388 = vector.shape_cast %387 : vector<1x1x8x1xf32> to vector<8x1xf32>
    %389 = vector.broadcast %388 : vector<8x1xf32> to vector<8x256xf32>
    %390 = arith.mulf %254, %389 : vector<8x256xf32>
    %391 = arith.addf %386, %390 : vector<8x256xf32>
    %392 = vector.extract_strided_slice %262 {offsets = [8, 2, 0, 0], sizes = [1, 1, 8, 1], strides = [1, 1, 1, 1]} : vector<9x3x8x1xf32> to vector<1x1x8x1xf32>
    %393 = vector.shape_cast %392 : vector<1x1x8x1xf32> to vector<8x1xf32>
    %394 = vector.broadcast %393 : vector<8x1xf32> to vector<8x256xf32>
    %395 = arith.mulf %261, %394 : vector<8x256xf32>
    %396 = arith.addf %391, %395 : vector<8x256xf32>
    %c254_i32 = arith.constant 254 : i32
    %397 = tpu.dynamic_rotate %396 by %c254_i32 dim 1 : vector<8x256xf32>, i32 -> vector<8x256xf32>
    %398 = arith.addf %352, %397 : vector<8x256xf32>
    %399 = vector.extract_strided_slice %398 {offsets = [0, 0], sizes = [8, 128], strides = [1, 1]} : vector<8x256xf32> to vector<8x128xf32>
    %400 = arith.negf %399 : vector<8x128xf32>
    %401 = math.exp %400 : vector<8x128xf32>
    %cst_76 = arith.constant 1.000000e+00 : f32
    %402 = vector.broadcast %cst_76 : f32 to vector<8x128xf32>
    %403 = arith.addf %402, %401 : vector<8x128xf32>
    %404 = arith.divf %402, %403 : vector<8x128xf32>
    %405 = arith.mulf %399, %404 : vector<8x128xf32>
    %cst_77 = arith.constant -2.200000e+00 : f32
    %406 = vector.broadcast %cst_77 : f32 to vector<8x128xf32>
    %407 = arith.cmpf oge, %399, %406 : vector<8x128xf32>
    %408 = arith.extui %407 : vector<8x128xi1> to vector<8x128xi32>
    %409 = arith.sitofp %408 : vector<8x128xi32> to vector<8x128xf32>
    %cst_78 = arith.constant -1.800000e+00 : f32
    %410 = vector.broadcast %cst_78 : f32 to vector<8x128xf32>
    %411 = arith.cmpf oge, %399, %410 : vector<8x128xf32>
    %412 = arith.extui %411 : vector<8x128xi1> to vector<8x128xi32>
    %413 = arith.sitofp %412 : vector<8x128xi32> to vector<8x128xf32>
    %cst_79 = arith.constant -1.400000e+00 : f32
    %414 = vector.broadcast %cst_79 : f32 to vector<8x128xf32>
    %415 = arith.cmpf oge, %399, %414 : vector<8x128xf32>
    %416 = arith.extui %415 : vector<8x128xi1> to vector<8x128xi32>
    %417 = arith.sitofp %416 : vector<8x128xi32> to vector<8x128xf32>
    %cst_80 = arith.constant -1.000000e+00 : f32
    %418 = vector.broadcast %cst_80 : f32 to vector<8x128xf32>
    %419 = arith.cmpf oge, %399, %418 : vector<8x128xf32>
    %420 = arith.extui %419 : vector<8x128xi1> to vector<8x128xi32>
    %421 = arith.sitofp %420 : vector<8x128xi32> to vector<8x128xf32>
    %cst_81 = arith.constant -6.000000e-01 : f32
    %422 = vector.broadcast %cst_81 : f32 to vector<8x128xf32>
    %423 = arith.cmpf oge, %399, %422 : vector<8x128xf32>
    %424 = arith.extui %423 : vector<8x128xi1> to vector<8x128xi32>
    %425 = arith.sitofp %424 : vector<8x128xi32> to vector<8x128xf32>
    %cst_82 = arith.constant -2.000000e-01 : f32
    %426 = vector.broadcast %cst_82 : f32 to vector<8x128xf32>
    %427 = arith.cmpf oge, %399, %426 : vector<8x128xf32>
    %428 = arith.extui %427 : vector<8x128xi1> to vector<8x128xi32>
    %429 = arith.sitofp %428 : vector<8x128xi32> to vector<8x128xf32>
    %cst_83 = arith.constant 2.000000e-01 : f32
    %430 = vector.broadcast %cst_83 : f32 to vector<8x128xf32>
    %431 = arith.cmpf oge, %399, %430 : vector<8x128xf32>
    %432 = arith.extui %431 : vector<8x128xi1> to vector<8x128xi32>
    %433 = arith.sitofp %432 : vector<8x128xi32> to vector<8x128xf32>
    %cst_84 = arith.constant 6.000000e-01 : f32
    %434 = vector.broadcast %cst_84 : f32 to vector<8x128xf32>
    %435 = arith.cmpf oge, %399, %434 : vector<8x128xf32>
    %436 = arith.extui %435 : vector<8x128xi1> to vector<8x128xi32>
    %437 = arith.sitofp %436 : vector<8x128xi32> to vector<8x128xf32>
    %cst_85 = arith.constant 1.000000e+00 : f32
    %438 = vector.broadcast %cst_85 : f32 to vector<8x128xf32>
    %439 = arith.cmpf oge, %399, %438 : vector<8x128xf32>
    %440 = arith.extui %439 : vector<8x128xi1> to vector<8x128xi32>
    %441 = arith.sitofp %440 : vector<8x128xi32> to vector<8x128xf32>
    %cst_86 = arith.constant 1.400000e+00 : f32
    %442 = vector.broadcast %cst_86 : f32 to vector<8x128xf32>
    %443 = arith.cmpf oge, %399, %442 : vector<8x128xf32>
    %444 = arith.extui %443 : vector<8x128xi1> to vector<8x128xi32>
    %445 = arith.sitofp %444 : vector<8x128xi32> to vector<8x128xf32>
    %cst_87 = arith.constant 1.800000e+00 : f32
    %446 = vector.broadcast %cst_87 : f32 to vector<8x128xf32>
    %447 = arith.cmpf oge, %399, %446 : vector<8x128xf32>
    %448 = arith.extui %447 : vector<8x128xi1> to vector<8x128xi32>
    %449 = arith.sitofp %448 : vector<8x128xi32> to vector<8x128xf32>
    %cst_88 = arith.constant 2.200000e+00 : f32
    %450 = vector.broadcast %cst_88 : f32 to vector<8x128xf32>
    %451 = arith.cmpf oge, %399, %450 : vector<8x128xf32>
    %452 = arith.extui %451 : vector<8x128xi1> to vector<8x128xi32>
    %453 = arith.sitofp %452 : vector<8x128xi32> to vector<8x128xf32>
    %454 = arith.subf %409, %413 : vector<8x128xf32>
    %455 = arith.subf %413, %417 : vector<8x128xf32>
    %456 = arith.subf %417, %421 : vector<8x128xf32>
    %457 = arith.subf %421, %425 : vector<8x128xf32>
    %458 = arith.subf %425, %429 : vector<8x128xf32>
    %459 = arith.subf %429, %433 : vector<8x128xf32>
    %460 = arith.subf %433, %437 : vector<8x128xf32>
    %461 = arith.subf %437, %441 : vector<8x128xf32>
    %462 = arith.subf %441, %445 : vector<8x128xf32>
    %463 = arith.subf %445, %449 : vector<8x128xf32>
    %464 = arith.subf %449, %453 : vector<8x128xf32>
    %cst_89 = arith.constant 2.500000e+00 : f32
    %465 = vector.broadcast %cst_89 : f32 to vector<8x128xf32>
    %466 = arith.mulf %399, %465 : vector<8x128xf32>
    %cst_90 = arith.constant -5.500000e+00 : f32
    %467 = vector.broadcast %cst_90 : f32 to vector<8x128xf32>
    %468 = arith.subf %466, %467 : vector<8x128xf32>
    %469 = arith.mulf %468, %454 : vector<8x128xf32>
    %cst_91 = arith.constant -3.500000e+00 : f32
    %470 = vector.broadcast %cst_91 : f32 to vector<8x128xf32>
    %471 = arith.subf %470, %466 : vector<8x128xf32>
    %472 = arith.mulf %471, %455 : vector<8x128xf32>
    %473 = arith.addf %469, %472 : vector<8x128xf32>
    %cst_92 = arith.constant -4.500000e+00 : f32
    %474 = vector.broadcast %cst_92 : f32 to vector<8x128xf32>
    %475 = arith.subf %466, %474 : vector<8x128xf32>
    %476 = arith.mulf %475, %455 : vector<8x128xf32>
    %cst_93 = arith.constant -2.500000e+00 : f32
    %477 = vector.broadcast %cst_93 : f32 to vector<8x128xf32>
    %478 = arith.subf %477, %466 : vector<8x128xf32>
    %479 = arith.mulf %478, %456 : vector<8x128xf32>
    %480 = arith.addf %476, %479 : vector<8x128xf32>
    %cst_94 = arith.constant -3.500000e+00 : f32
    %481 = vector.broadcast %cst_94 : f32 to vector<8x128xf32>
    %482 = arith.subf %466, %481 : vector<8x128xf32>
    %483 = arith.mulf %482, %456 : vector<8x128xf32>
    %cst_95 = arith.constant -1.500000e+00 : f32
    %484 = vector.broadcast %cst_95 : f32 to vector<8x128xf32>
    %485 = arith.subf %484, %466 : vector<8x128xf32>
    %486 = arith.mulf %485, %457 : vector<8x128xf32>
    %487 = arith.addf %483, %486 : vector<8x128xf32>
    %cst_96 = arith.constant -2.500000e+00 : f32
    %488 = vector.broadcast %cst_96 : f32 to vector<8x128xf32>
    %489 = arith.subf %466, %488 : vector<8x128xf32>
    %490 = arith.mulf %489, %457 : vector<8x128xf32>
    %cst_97 = arith.constant -5.000000e-01 : f32
    %491 = vector.broadcast %cst_97 : f32 to vector<8x128xf32>
    %492 = arith.subf %491, %466 : vector<8x128xf32>
    %493 = arith.mulf %492, %458 : vector<8x128xf32>
    %494 = arith.addf %490, %493 : vector<8x128xf32>
    %cst_98 = arith.constant -1.500000e+00 : f32
    %495 = vector.broadcast %cst_98 : f32 to vector<8x128xf32>
    %496 = arith.subf %466, %495 : vector<8x128xf32>
    %497 = arith.mulf %496, %458 : vector<8x128xf32>
    %cst_99 = arith.constant 5.000000e-01 : f32
    %498 = vector.broadcast %cst_99 : f32 to vector<8x128xf32>
    %499 = arith.subf %498, %466 : vector<8x128xf32>
    %500 = arith.mulf %499, %459 : vector<8x128xf32>
    %501 = arith.addf %497, %500 : vector<8x128xf32>
    %cst_100 = arith.constant -5.000000e-01 : f32
    %502 = vector.broadcast %cst_100 : f32 to vector<8x128xf32>
    %503 = arith.subf %466, %502 : vector<8x128xf32>
    %504 = arith.mulf %503, %459 : vector<8x128xf32>
    %cst_101 = arith.constant 1.500000e+00 : f32
    %505 = vector.broadcast %cst_101 : f32 to vector<8x128xf32>
    %506 = arith.subf %505, %466 : vector<8x128xf32>
    %507 = arith.mulf %506, %460 : vector<8x128xf32>
    %508 = arith.addf %504, %507 : vector<8x128xf32>
    %cst_102 = arith.constant 5.000000e-01 : f32
    %509 = vector.broadcast %cst_102 : f32 to vector<8x128xf32>
    %510 = arith.subf %466, %509 : vector<8x128xf32>
    %511 = arith.mulf %510, %460 : vector<8x128xf32>
    %cst_103 = arith.constant 2.500000e+00 : f32
    %512 = vector.broadcast %cst_103 : f32 to vector<8x128xf32>
    %513 = arith.subf %512, %466 : vector<8x128xf32>
    %514 = arith.mulf %513, %461 : vector<8x128xf32>
    %515 = arith.addf %511, %514 : vector<8x128xf32>
    %cst_104 = arith.constant 1.500000e+00 : f32
    %516 = vector.broadcast %cst_104 : f32 to vector<8x128xf32>
    %517 = arith.subf %466, %516 : vector<8x128xf32>
    %518 = arith.mulf %517, %461 : vector<8x128xf32>
    %cst_105 = arith.constant 3.500000e+00 : f32
    %519 = vector.broadcast %cst_105 : f32 to vector<8x128xf32>
    %520 = arith.subf %519, %466 : vector<8x128xf32>
    %521 = arith.mulf %520, %462 : vector<8x128xf32>
    %522 = arith.addf %518, %521 : vector<8x128xf32>
    %cst_106 = arith.constant 2.500000e+00 : f32
    %523 = vector.broadcast %cst_106 : f32 to vector<8x128xf32>
    %524 = arith.subf %466, %523 : vector<8x128xf32>
    %525 = arith.mulf %524, %462 : vector<8x128xf32>
    %cst_107 = arith.constant 4.500000e+00 : f32
    %526 = vector.broadcast %cst_107 : f32 to vector<8x128xf32>
    %527 = arith.subf %526, %466 : vector<8x128xf32>
    %528 = arith.mulf %527, %463 : vector<8x128xf32>
    %529 = arith.addf %525, %528 : vector<8x128xf32>
    %cst_108 = arith.constant 3.500000e+00 : f32
    %530 = vector.broadcast %cst_108 : f32 to vector<8x128xf32>
    %531 = arith.subf %466, %530 : vector<8x128xf32>
    %532 = arith.mulf %531, %463 : vector<8x128xf32>
    %cst_109 = arith.constant 5.500000e+00 : f32
    %533 = vector.broadcast %cst_109 : f32 to vector<8x128xf32>
    %534 = arith.subf %533, %466 : vector<8x128xf32>
    %535 = arith.mulf %534, %464 : vector<8x128xf32>
    %536 = arith.addf %532, %535 : vector<8x128xf32>
    %cst_110 = arith.constant 1.250000e+00 : f32
    %537 = vector.broadcast %cst_110 : f32 to vector<8x128xf32>
    %538 = arith.mulf %399, %537 : vector<8x128xf32>
    %cst_111 = arith.constant -2.750000e+00 : f32
    %539 = vector.broadcast %cst_111 : f32 to vector<8x128xf32>
    %540 = arith.subf %538, %539 : vector<8x128xf32>
    %541 = arith.mulf %540, %473 : vector<8x128xf32>
    %cst_112 = arith.constant -1.250000e+00 : f32
    %542 = vector.broadcast %cst_112 : f32 to vector<8x128xf32>
    %543 = arith.subf %542, %538 : vector<8x128xf32>
    %544 = arith.mulf %543, %480 : vector<8x128xf32>
    %545 = arith.addf %541, %544 : vector<8x128xf32>
    %cst_113 = arith.constant -2.250000e+00 : f32
    %546 = vector.broadcast %cst_113 : f32 to vector<8x128xf32>
    %547 = arith.subf %538, %546 : vector<8x128xf32>
    %548 = arith.mulf %547, %480 : vector<8x128xf32>
    %cst_114 = arith.constant -7.500000e-01 : f32
    %549 = vector.broadcast %cst_114 : f32 to vector<8x128xf32>
    %550 = arith.subf %549, %538 : vector<8x128xf32>
    %551 = arith.mulf %550, %487 : vector<8x128xf32>
    %552 = arith.addf %548, %551 : vector<8x128xf32>
    %cst_115 = arith.constant -1.750000e+00 : f32
    %553 = vector.broadcast %cst_115 : f32 to vector<8x128xf32>
    %554 = arith.subf %538, %553 : vector<8x128xf32>
    %555 = arith.mulf %554, %487 : vector<8x128xf32>
    %cst_116 = arith.constant -2.500000e-01 : f32
    %556 = vector.broadcast %cst_116 : f32 to vector<8x128xf32>
    %557 = arith.subf %556, %538 : vector<8x128xf32>
    %558 = arith.mulf %557, %494 : vector<8x128xf32>
    %559 = arith.addf %555, %558 : vector<8x128xf32>
    %cst_117 = arith.constant -1.250000e+00 : f32
    %560 = vector.broadcast %cst_117 : f32 to vector<8x128xf32>
    %561 = arith.subf %538, %560 : vector<8x128xf32>
    %562 = arith.mulf %561, %494 : vector<8x128xf32>
    %cst_118 = arith.constant 2.500000e-01 : f32
    %563 = vector.broadcast %cst_118 : f32 to vector<8x128xf32>
    %564 = arith.subf %563, %538 : vector<8x128xf32>
    %565 = arith.mulf %564, %501 : vector<8x128xf32>
    %566 = arith.addf %562, %565 : vector<8x128xf32>
    %cst_119 = arith.constant -7.500000e-01 : f32
    %567 = vector.broadcast %cst_119 : f32 to vector<8x128xf32>
    %568 = arith.subf %538, %567 : vector<8x128xf32>
    %569 = arith.mulf %568, %501 : vector<8x128xf32>
    %cst_120 = arith.constant 7.500000e-01 : f32
    %570 = vector.broadcast %cst_120 : f32 to vector<8x128xf32>
    %571 = arith.subf %570, %538 : vector<8x128xf32>
    %572 = arith.mulf %571, %508 : vector<8x128xf32>
    %573 = arith.addf %569, %572 : vector<8x128xf32>
    %cst_121 = arith.constant -2.500000e-01 : f32
    %574 = vector.broadcast %cst_121 : f32 to vector<8x128xf32>
    %575 = arith.subf %538, %574 : vector<8x128xf32>
    %576 = arith.mulf %575, %508 : vector<8x128xf32>
    %cst_122 = arith.constant 1.250000e+00 : f32
    %577 = vector.broadcast %cst_122 : f32 to vector<8x128xf32>
    %578 = arith.subf %577, %538 : vector<8x128xf32>
    %579 = arith.mulf %578, %515 : vector<8x128xf32>
    %580 = arith.addf %576, %579 : vector<8x128xf32>
    %cst_123 = arith.constant 2.500000e-01 : f32
    %581 = vector.broadcast %cst_123 : f32 to vector<8x128xf32>
    %582 = arith.subf %538, %581 : vector<8x128xf32>
    %583 = arith.mulf %582, %515 : vector<8x128xf32>
    %cst_124 = arith.constant 1.750000e+00 : f32
    %584 = vector.broadcast %cst_124 : f32 to vector<8x128xf32>
    %585 = arith.subf %584, %538 : vector<8x128xf32>
    %586 = arith.mulf %585, %522 : vector<8x128xf32>
    %587 = arith.addf %583, %586 : vector<8x128xf32>
    %cst_125 = arith.constant 7.500000e-01 : f32
    %588 = vector.broadcast %cst_125 : f32 to vector<8x128xf32>
    %589 = arith.subf %538, %588 : vector<8x128xf32>
    %590 = arith.mulf %589, %522 : vector<8x128xf32>
    %cst_126 = arith.constant 2.250000e+00 : f32
    %591 = vector.broadcast %cst_126 : f32 to vector<8x128xf32>
    %592 = arith.subf %591, %538 : vector<8x128xf32>
    %593 = arith.mulf %592, %529 : vector<8x128xf32>
    %594 = arith.addf %590, %593 : vector<8x128xf32>
    %cst_127 = arith.constant 1.250000e+00 : f32
    %595 = vector.broadcast %cst_127 : f32 to vector<8x128xf32>
    %596 = arith.subf %538, %595 : vector<8x128xf32>
    %597 = arith.mulf %596, %529 : vector<8x128xf32>
    %cst_128 = arith.constant 2.750000e+00 : f32
    %598 = vector.broadcast %cst_128 : f32 to vector<8x128xf32>
    %599 = arith.subf %598, %538 : vector<8x128xf32>
    %600 = arith.mulf %599, %536 : vector<8x128xf32>
    %601 = arith.addf %597, %600 : vector<8x128xf32>
    %cst_129 = arith.constant 0.833333313 : f32
    %602 = vector.broadcast %cst_129 : f32 to vector<8x128xf32>
    %603 = arith.mulf %399, %602 : vector<8x128xf32>
    %cst_130 = arith.constant -1.83333337 : f32
    %604 = vector.broadcast %cst_130 : f32 to vector<8x128xf32>
    %605 = arith.subf %603, %604 : vector<8x128xf32>
    %606 = arith.mulf %605, %545 : vector<8x128xf32>
    %cst_131 = arith.constant -5.000000e-01 : f32
    %607 = vector.broadcast %cst_131 : f32 to vector<8x128xf32>
    %608 = arith.subf %607, %603 : vector<8x128xf32>
    %609 = arith.mulf %608, %552 : vector<8x128xf32>
    %610 = arith.addf %606, %609 : vector<8x128xf32>
    %cst_132 = arith.constant -1.500000e+00 : f32
    %611 = vector.broadcast %cst_132 : f32 to vector<8x128xf32>
    %612 = arith.subf %603, %611 : vector<8x128xf32>
    %613 = arith.mulf %612, %552 : vector<8x128xf32>
    %cst_133 = arith.constant -0.166666672 : f32
    %614 = vector.broadcast %cst_133 : f32 to vector<8x128xf32>
    %615 = arith.subf %614, %603 : vector<8x128xf32>
    %616 = arith.mulf %615, %559 : vector<8x128xf32>
    %617 = arith.addf %613, %616 : vector<8x128xf32>
    %cst_134 = arith.constant -1.16666663 : f32
    %618 = vector.broadcast %cst_134 : f32 to vector<8x128xf32>
    %619 = arith.subf %603, %618 : vector<8x128xf32>
    %620 = arith.mulf %619, %559 : vector<8x128xf32>
    %cst_135 = arith.constant 0.166666672 : f32
    %621 = vector.broadcast %cst_135 : f32 to vector<8x128xf32>
    %622 = arith.subf %621, %603 : vector<8x128xf32>
    %623 = arith.mulf %622, %566 : vector<8x128xf32>
    %624 = arith.addf %620, %623 : vector<8x128xf32>
    %cst_136 = arith.constant -0.833333313 : f32
    %625 = vector.broadcast %cst_136 : f32 to vector<8x128xf32>
    %626 = arith.subf %603, %625 : vector<8x128xf32>
    %627 = arith.mulf %626, %566 : vector<8x128xf32>
    %cst_137 = arith.constant 5.000000e-01 : f32
    %628 = vector.broadcast %cst_137 : f32 to vector<8x128xf32>
    %629 = arith.subf %628, %603 : vector<8x128xf32>
    %630 = arith.mulf %629, %573 : vector<8x128xf32>
    %631 = arith.addf %627, %630 : vector<8x128xf32>
    %cst_138 = arith.constant -5.000000e-01 : f32
    %632 = vector.broadcast %cst_138 : f32 to vector<8x128xf32>
    %633 = arith.subf %603, %632 : vector<8x128xf32>
    %634 = arith.mulf %633, %573 : vector<8x128xf32>
    %cst_139 = arith.constant 0.833333313 : f32
    %635 = vector.broadcast %cst_139 : f32 to vector<8x128xf32>
    %636 = arith.subf %635, %603 : vector<8x128xf32>
    %637 = arith.mulf %636, %580 : vector<8x128xf32>
    %638 = arith.addf %634, %637 : vector<8x128xf32>
    %cst_140 = arith.constant -0.166666672 : f32
    %639 = vector.broadcast %cst_140 : f32 to vector<8x128xf32>
    %640 = arith.subf %603, %639 : vector<8x128xf32>
    %641 = arith.mulf %640, %580 : vector<8x128xf32>
    %cst_141 = arith.constant 1.16666663 : f32
    %642 = vector.broadcast %cst_141 : f32 to vector<8x128xf32>
    %643 = arith.subf %642, %603 : vector<8x128xf32>
    %644 = arith.mulf %643, %587 : vector<8x128xf32>
    %645 = arith.addf %641, %644 : vector<8x128xf32>
    %cst_142 = arith.constant 0.166666672 : f32
    %646 = vector.broadcast %cst_142 : f32 to vector<8x128xf32>
    %647 = arith.subf %603, %646 : vector<8x128xf32>
    %648 = arith.mulf %647, %587 : vector<8x128xf32>
    %cst_143 = arith.constant 1.500000e+00 : f32
    %649 = vector.broadcast %cst_143 : f32 to vector<8x128xf32>
    %650 = arith.subf %649, %603 : vector<8x128xf32>
    %651 = arith.mulf %650, %594 : vector<8x128xf32>
    %652 = arith.addf %648, %651 : vector<8x128xf32>
    %cst_144 = arith.constant 5.000000e-01 : f32
    %653 = vector.broadcast %cst_144 : f32 to vector<8x128xf32>
    %654 = arith.subf %603, %653 : vector<8x128xf32>
    %655 = arith.mulf %654, %594 : vector<8x128xf32>
    %cst_145 = arith.constant 1.83333337 : f32
    %656 = vector.broadcast %cst_145 : f32 to vector<8x128xf32>
    %657 = arith.subf %656, %603 : vector<8x128xf32>
    %658 = arith.mulf %657, %601 : vector<8x128xf32>
    %659 = arith.addf %655, %658 : vector<8x128xf32>
    %660 = tpu.concatenate %405, %610, %617, %624, %631, %638, %645, %652, %659 in 0 : vector<8x128xf32>, vector<8x128xf32>, vector<8x128xf32>, vector<8x128xf32>, vector<8x128xf32>, vector<8x128xf32>, vector<8x128xf32>, vector<8x128xf32>, vector<8x128xf32> -> vector<72x128xf32>
    %661 = arith.truncf %660 : vector<72x128xf32> to vector<72x128xbf16>
    %c0_146 = arith.constant 0 : index
    %c0_147 = arith.constant 0 : index
    %662 = vector.load %arg4[%c0_146, %c0_147] : memref<8x72xbf16, #tpu.memory_space<vmem>>, vector<8x72xbf16>
    %cst_148 = arith.constant dense<0.000000e+00> : vector<8x128xf32>
    %663 = tpu.matmul %662, %661, %cst_148 {dimension_numbers = #tpu.dot_dimension_numbers<[1], [0], [0], [1], [0, 0, 1, 1], [], []>} : vector<8x72xbf16>, vector<72x128xbf16>, vector<8x128xf32> -> vector<8x128xf32>
    %c0_149 = arith.constant 0 : index
    %c0_150 = arith.constant 0 : index
    %c0_151 = arith.constant 0 : index
    %664 = vector.load %arg5[%c0_149, %c0_150, %c0_151] : memref<1x8x128xf32, #tpu.memory_space<vmem>>, vector<1x8x128xf32>
    %665 = vector.shape_cast %664 : vector<1x8x128xf32> to vector<8x128xf32>
    %666 = vector.shape_cast %663 : vector<8x128xf32> to vector<1x8x128xf32>
    tpu.vector_store %arg5[%c0_149, %c0_150, %c0_151], %666 {strides = array<i32>} : memref<1x8x128xf32, #tpu.memory_space<vmem>>, vector<1x8x128xf32>,
    return
  }
  func.func @transform_0(%arg0: i32, %arg1: i32) -> (i32, i32, i32, i32) {
    %c0_i32 = arith.constant 0 : i32
    %c0_i32_0 = arith.constant 0 : i32
    %c0_i32_1 = arith.constant 0 : i32
    return %arg0, %arg1, %c0_i32, %c0_i32_0 : i32, i32, i32, i32
  }
  func.func @transform_1(%arg0: i32, %arg1: i32) -> (i32, i32, i32, i32) {
    %c0_i32 = arith.constant 0 : i32
    %c0_i32_0 = arith.constant 0 : i32
    %c0_i32_1 = arith.constant 0 : i32
    %c0_i32_2 = arith.constant 0 : i32
    %c0_i32_3 = arith.constant 0 : i32
    return %c0_i32, %c0_i32_0, %c0_i32_1, %c0_i32_2 : i32, i32, i32, i32
  }
  func.func @transform_2(%arg0: i32, %arg1: i32) -> (i32, i32) {
    %c0_i32 = arith.constant 0 : i32
    %c0_i32_0 = arith.constant 0 : i32
    %c0_i32_1 = arith.constant 0 : i32
    return %c0_i32, %c0_i32_0 : i32, i32
  }
  func.func @transform_3(%arg0: i32, %arg1: i32) -> (i32, i32, i32) {
    %c0_i32 = arith.constant 0 : i32
    %c0_i32_0 = arith.constant 0 : i32
    return %arg0, %c0_i32, %arg1 : i32, i32, i32
  }
}

</mosaic_0001>

<llo_original>
// kernel: a_call__.2
$region0: #{a_call__.2}
  #allocation0 [shape = 'u32[]', space=smem, size = 0x4, offset = 0x4, fixed_abs, tag = 'smem constant byte address 0x4 - core index']
  #allocation1 [shape = 'u32[144,128]{1,0:T(1,128)}', space=vmem, size = 0x12000, scoped, tag = 'internal scratch']
  %s0 = inlined_call_operand.vmem [shape: f32[2,1,8,256], index: 0, kind: input, shape index: {}]
  %s1 = inlined_call_operand.vmem [shape: f32[9,3,8,1], index: 1, kind: input, shape index: {}]
  %s2 = inlined_call_operand.vmem [shape: bf16[8,72], index: 2, kind: input, shape index: {}]
  %s3 = inlined_call_operand.vmem [shape: f32[2,8,128], index: 3, kind: output, shape index: {}]
  %s4 = sld [smem:[#allocation0]]
  $region45: #{a_call__.2} parent=0
    _
  %s6 = ssub.s32 1, %s4
  %s7 = scalar_select 0, %s6, %s4
  loop: start=0, step=1, limit=4
  $region2: #{a_call__.2} parent=0 // loop_pre_header
    _
  $region3: #{a_call__.2} parent=0 // loop_header
    %s9 = sphi 0, %s13
    %p10 = scmp.ge.s32.totalorder %s9, 4
    %s16 = sphi 0, %s28
    %s17 = sphi 0, %s24
    %s18 = sphi 0, %s16
    %s19 = sphi 0, %s17
    %s20 = sphi 0, %s18
    %s21 = sphi 0, %s19
    %s33 = sphi 0, %s35
    %s36 = sphi 0, %s33
    %s37 = sphi 0, %s36
    %s53 = sphi 0, %s37
    %s57 = sphi 0, %s57
    %s59 = sphi 0, %s57
    %s60 = sphi 0, %s59
    %s74 = sphi 0, %s60
    %s78 = sphi 0, %s78
    %s80 = sphi 0, %s78
    %s81 = sphi 0, %s80
    %s95 = sphi 0, %s81
    %s103 = sphi 0, %s105
    %s106 = sphi 0, %s103
    %s107 = sphi 0, %s106
    %s123 = sphi 0, %s107
  $region4: #{a_call__.2} parent=0 // loop_header_branch
    %12 = sbr.rel (%p10) target = $region8
  $region5: #{a_call__.2} parent=0 // loop_body
    %s14 = ssub.s32 %s9, 1
    %s15 = ssub.s32 %s9, 2
    %s22 = sadd.s32 1, %s17
    %p23 = scmp.ge.s32.totalorder %s22, 1
    %s24 = scalar_select %p23, 0, %s22
    %s25 = sadd.s32 1, %s16
    %s26 = scalar_select %p23, %s25, %s16
    %p27 = scmp.ge.s32.totalorder %s26, 2
    %s28 = scalar_select %p27, 0, %s26
    %s29 = ssub.s32 %s16, %s28
    %s30 = ssub.s32 %s17, %s24
    %s31 = sor.u32 %s29, %s30
    %p32 = scmp.eq.s32.totalorder %s31, 0
    %s34 = sadd.s32 %s33, 1
    %s35 = scalar_select %p32, %s33, %s34
    %p38 = pneg %p32
    %p39 = scmp.eq.s32.totalorder %s9, 1
    %p40 = por %p38, %p39
    %p41 = scmp.ne.s32.totalorder %s33, %s36
    %p42 = scmp.eq.s32.totalorder %s9, 0
    %p43 = por %p41, %p42
    %p44 = scmp.ne.s32.totalorder %s33, %s36
    %p45 = scmp.eq.s32.totalorder %s14, 1
    %p46 = por %p44, %p45
    %p47 = scmp.ne.s32.totalorder %s36, %s37
    %p48 = scmp.eq.s32.totalorder %s14, 0
    %p49 = por %p47, %p48
    %p50 = scmp.ne.s32.totalorder %s36, %s37
    %p51 = scmp.eq.s32.totalorder %s15, 1
    %p52 = por %p50, %p51
    %p54 = scmp.ne.s32.totalorder %s37, %s53
    %p55 = scmp.eq.s32.totalorder %s15, 0
    %p56 = por %p54, %p55
    %s58 = sadd.s32 %s57, 1
    %p61 = scmp.eq.s32.totalorder %s9, 1
    %p62 = scmp.ne.s32.totalorder %s57, %s59
    %p63 = scmp.eq.s32.totalorder %s9, 0
    %p64 = por %p62, %p63
    %p65 = scmp.ne.s32.totalorder %s57, %s59
    %p66 = scmp.eq.s32.totalorder %s14, 1
    %p67 = por %p65, %p66
    %p68 = scmp.ne.s32.totalorder %s59, %s60
    %p69 = scmp.eq.s32.totalorder %s14, 0
    %p70 = por %p68, %p69
    %p71 = scmp.ne.s32.totalorder %s59, %s60
    %p72 = scmp.eq.s32.totalorder %s15, 1
    %p73 = por %p71, %p72
    %p75 = scmp.ne.s32.totalorder %s60, %s74
    %p76 = scmp.eq.s32.totalorder %s15, 0
    %p77 = por %p75, %p76
    %s79 = sadd.s32 %s78, 1
    %p82 = scmp.eq.s32.totalorder %s9, 1
    %p83 = scmp.ne.s32.totalorder %s78, %s80
    %p84 = scmp.eq.s32.totalorder %s9, 0
    %p85 = por %p83, %p84
    %p86 = scmp.ne.s32.totalorder %s78, %s80
    %p87 = scmp.eq.s32.totalorder %s14, 1
    %p88 = por %p86, %p87
    %p89 = scmp.ne.s32.totalorder %s80, %s81
    %p90 = scmp.eq.s32.totalorder %s14, 0
    %p91 = por %p89, %p90
    %p92 = scmp.ne.s32.totalorder %s80, %s81
    %p93 = scmp.eq.s32.totalorder %s15, 1
    %p94 = por %p92, %p93
    %p96 = scmp.ne.s32.totalorder %s81, %s95
    %p97 = scmp.eq.s32.totalorder %s15, 0
    %p98 = por %p96, %p97
    %s99 = ssub.s32 %s16, %s28
    %s100 = ssub.s32 %s17, %s24
    %s101 = sor.u32 %s99, %s100
    %p102 = scmp.eq.s32.totalorder %s101, 0
    %s104 = sadd.s32 %s103, 1
    %s105 = scalar_select %p102, %s103, %s104
    %p108 = pneg %p102
    %p109 = scmp.eq.s32.totalorder %s9, 1
    %p110 = por %p108, %p109
    %p111 = scmp.ne.s32.totalorder %s103, %s106
    %p112 = scmp.eq.s32.totalorder %s9, 0
    %p113 = por %p111, %p112
    %p114 = scmp.ne.s32.totalorder %s103, %s106
    %p115 = scmp.eq.s32.totalorder %s14, 1
    %p116 = por %p114, %p115
    %p117 = scmp.ne.s32.totalorder %s106, %s107
    %p118 = scmp.eq.s32.totalorder %s14, 0
    %p119 = por %p117, %p118
    %p120 = scmp.ne.s32.totalorder %s106, %s107
    %p121 = scmp.eq.s32.totalorder %s15, 1
    %p122 = por %p120, %p121
    %p124 = scmp.ne.s32.totalorder %s107, %s123
    %p125 = scmp.eq.s32.totalorder %s15, 0
    %p126 = por %p124, %p125
    %p127 = scmp.le.s32.totalorder 1, %s9
    %p128 = scmp.lt.s32.totalorder %s9, 3
    %p129 = pnand %p127, %p128
    %p130 = pneg %p129
    // Predicated region
    $region9: #{a_call__.2} parent=5 // pred_check
      _
    $region10: #{a_call__.2} parent=5 // pred_check_branch
      %132 = sbr.rel (%p129) target = $region12
    $region11: #{a_call__.2} parent=5 // pred_region
      %s133 = ssub.s32 %s9, 1
      // Predicated region
      $region13: #{a_call__.2} parent=11 // pred_check
        %p134 = pneg %p70
      $region14: #{a_call__.2} parent=11 // pred_check_branch
        %136 = sbr.rel (%p134) target = $region16
      $region15: #{a_call__.2} parent=11 // pred_region
        _
      $region16: #{a_call__.2} parent=11 // pred_fallthru
        _
      // Predicated region
      $region17: #{a_call__.2} parent=11 // pred_check
        %p137 = pneg %p91
      $region18: #{a_call__.2} parent=11 // pred_check_branch
        %139 = sbr.rel (%p137) target = $region20
      $region19: #{a_call__.2} parent=11 // pred_region
        _
      $region20: #{a_call__.2} parent=11 // pred_fallthru
        _
    $region12: #{a_call__.2} parent=5 // pred_fallthru
      _
    %p140 = scmp.lt.s32.totalorder %s9, 2
    // Predicated region
    $region21: #{a_call__.2} parent=5 // pred_check
      %p141 = pneg %p140
    $region22: #{a_call__.2} parent=5 // pred_check_branch
      %143 = sbr.rel (%p141) target = $region24
    $region23: #{a_call__.2} parent=5 // pred_region
      // Predicated region
      $region25: #{a_call__.2} parent=23 // pred_check
        %p144 = pneg %p43
      $region26: #{a_call__.2} parent=23 // pred_check_branch
        %146 = sbr.rel (%p144) target = $region28
      $region27: #{a_call__.2} parent=23 // pred_region
        %p147 = scmp.lt.s32.totalorder %s16, 1
        %s148 = scalar_select %p147, %s16, 1
        %p149 = scmp.lt.s32.totalorder %s17, 0
        %s150 = scalar_select %p149, %s17, 0
        %s151 = smul.addr %s150, 2
        %s152 = smul.addr %s148, 2
        %s153 = sadd.s32 %s151, %s152
        %s154 = smul.addr %s153, 8
        %s155 = scalar_lea.vmem %s0, %s154
      $region28: #{a_call__.2} parent=23 // pred_fallthru
        _
    $region24: #{a_call__.2} parent=5 // pred_fallthru
      _
    %p156 = scmp.le.s32.totalorder 1, %s9
    %p157 = scmp.lt.s32.totalorder %s9, 3
    %p158 = pnand %p156, %p157
    %p159 = pneg %p158
    // Predicated region
    $region29: #{a_call__.2} parent=5 // pred_check
      _
    $region30: #{a_call__.2} parent=5 // pred_check_branch
      %161 = sbr.rel (%p158) target = $region32
    $region31: #{a_call__.2} parent=5 // pred_region
      %s162 = ssub.s32 %s9, 1
      %p163 = scmp.lt.s32.totalorder %s18, 1
      %s164 = scalar_select %p163, %s18, 1
      %p165 = scmp.lt.s32.totalorder %s19, 0
      %s166 = scalar_select %p165, %s19, 0
      %s167 = smul.addr %s166, 2
      %s168 = smul.addr %s164, 2
      %s169 = sadd.s32 %s167, %s168
      %s170 = smul.addr %s169, 8
      %s171 = scalar_lea.vmem %s0, %s170
      %p172 = pneg %p49
      %p173 = pneg %p46
      %p174 = pneg %p70
      %p175 = pneg %p67
      %p176 = pneg %p91
      %p177 = pneg %p88
      %p178 = pneg %p119
      %p179 = pneg %p116
      %p180 = scmp.lt.s32.totalorder %s18, 1
      %s181 = scalar_select %p180, %s18, 1
      %p182 = scmp.lt.s32.totalorder %s19, 0
      %s183 = scalar_select %p182, %s19, 0
      %s184 = sadd.s32 %s183, %s181
      %s185 = smul.addr %s184, 8
      %s186 = scalar_lea.vmem %s3, %s185
      %p187 = scmp.lt.s32.totalorder %s18, 1
      %s188 = scalar_select %p187, %s18, 1
      %p189 = scmp.lt.s32.totalorder %s19, 0
      %s190 = scalar_select %p189, %s19, 0
      %s191 = smul.addr %s190, 2
      %s192 = smul.addr %s188, 2
      %s193 = sadd.s32 %s191, %s192
      %s194 = smul.addr %s193, 8
      %s195 = scalar_lea.vmem %s0, %s194
      %p196 = scmp.lt.s32.totalorder %s18, 1
      %s197 = scalar_select %p196, %s18, 1
      %p198 = scmp.lt.s32.totalorder %s19, 0
      %s199 = scalar_select %p198, %s19, 0
      %s200 = sadd.s32 %s199, %s197
      %s201 = smul.addr %s200, 8
      %s202 = scalar_lea.vmem %s3, %s201
      %v204 = vld [vmem:[%s195] sm:$0xff]
      %v205 = vld [vmem:[%s195 + $0x8] sm:$0xff]
      %v206 = vxor.u32 %v204, 2147483648
      %v207 = vxor.u32 %v205, 2147483648
      %v208 = vmul.f32 %v206, 1.442695
      %v209 = vpow.pop %v208
      %v210 = vmul.f32 %v207, 1.442695
      %v211 = vpow.pop %v210
      %v212 = vadd.f32 %v209, 1.0
      %v213 = vadd.f32 %v211, 1.0
      %v214 = vrcp.pop %v212
      %v215 = vmul.f32 1.0, %v214
      %v216 = vrcp.pop %v213
      %v217 = vmul.f32 1.0, %v216
      %v218 = vmul.f32 %v204, %v215
      %v219 = vmul.f32 %v205, %v217
      %vm220 = vcmp.ge.f32.partialorder %v204, -2.2
      %vm221 = vcmp.ge.f32.partialorder %v205, -2.2
      %v222 = vsel %vm220, 1, 0
      %v223 = vsel %vm221, 1, 0
      %v224 = vcvt.s32.f32 %v222
      %v225 = vcvt.s32.f32 %v223
      %vm226 = vcmp.ge.f32.partialorder %v204, -1.8
      %vm227 = vcmp.ge.f32.partialorder %v205, -1.8
      %v228 = vsel %vm226, 1, 0
      %v229 = vsel %vm227, 1, 0
      %v230 = vcvt.s32.f32 %v228
      %v231 = vcvt.s32.f32 %v229
      %vm232 = vcmp.ge.f32.partialorder %v204, -1.4
      %vm233 = vcmp.ge.f32.partialorder %v205, -1.4
      %v234 = vsel %vm232, 1, 0
      %v235 = vsel %vm233, 1, 0
      %v236 = vcvt.s32.f32 %v234
      %v237 = vcvt.s32.f32 %v235
      %vm238 = vcmp.ge.f32.partialorder %v204, -1.0
      %vm239 = vcmp.ge.f32.partialorder %v205, -1.0
      %v240 = vsel %vm238, 1, 0
      %v241 = vsel %vm239, 1, 0
      %v242 = vcvt.s32.f32 %v240
      %v243 = vcvt.s32.f32 %v241
      %vm244 = vcmp.ge.f32.partialorder %v204, -0.6
      %vm245 = vcmp.ge.f32.partialorder %v205, -0.6
      %v246 = vsel %vm244, 1, 0
      %v247 = vsel %vm245, 1, 0
      %v248 = vcvt.s32.f32 %v246
      %v249 = vcvt.s32.f32 %v247
      %vm250 = vcmp.ge.f32.partialorder %v204, -0.2
      %vm251 = vcmp.ge.f32.partialorder %v205, -0.2
      %v252 = vsel %vm250, 1, 0
      %v253 = vsel %vm251, 1, 0
      %v254 = vcvt.s32.f32 %v252
      %v255 = vcvt.s32.f32 %v253
      %vm256 = vcmp.ge.f32.partialorder %v204, 0.2
      %vm257 = vcmp.ge.f32.partialorder %v205, 0.2
      %v258 = vsel %vm256, 1, 0
      %v259 = vsel %vm257, 1, 0
      %v260 = vcvt.s32.f32 %v258
      %v261 = vcvt.s32.f32 %v259
      %vm262 = vcmp.ge.f32.partialorder %v204, 0.6
      %vm263 = vcmp.ge.f32.partialorder %v205, 0.6
      %v264 = vsel %vm262, 1, 0
      %v265 = vsel %vm263, 1, 0
      %v266 = vcvt.s32.f32 %v264
      %v267 = vcvt.s32.f32 %v265
      %vm268 = vcmp.ge.f32.partialorder %v204, 1.0
      %vm269 = vcmp.ge.f32.partialorder %v205, 1.0
      %v270 = vsel %vm268, 1, 0
      %v271 = vsel %vm269, 1, 0
      %v272 = vcvt.s32.f32 %v270
      %v273 = vcvt.s32.f32 %v271
      %vm274 = vcmp.ge.f32.partialorder %v204, 1.4
      %vm275 = vcmp.ge.f32.partialorder %v205, 1.4
      %v276 = vsel %vm274, 1, 0
      %v277 = vsel %vm275, 1, 0
      %v278 = vcvt.s32.f32 %v276
      %v279 = vcvt.s32.f32 %v277
      %vm280 = vcmp.ge.f32.partialorder %v204, 1.8
      %vm281 = vcmp.ge.f32.partialorder %v205, 1.8
      %v282 = vsel %vm280, 1, 0
      %v283 = vsel %vm281, 1, 0
      %v284 = vcvt.s32.f32 %v282
      %v285 = vcvt.s32.f32 %v283
      %vm286 = vcmp.ge.f32.partialorder %v204, 2.2
      %vm287 = vcmp.ge.f32.partialorder %v205, 2.2
      %v288 = vsel %vm286, 1, 0
      %v289 = vsel %vm287, 1, 0
      %v290 = vcvt.s32.f32 %v288
      %v291 = vcvt.s32.f32 %v289
      %v292 = vsub.f32 %v224, %v230
      %v293 = vsub.f32 %v225, %v231
      %v294 = vsub.f32 %v230, %v236
      %v295 = vsub.f32 %v231, %v237
      %v296 = vsub.f32 %v236, %v242
      %v297 = vsub.f32 %v237, %v243
      %v298 = vsub.f32 %v242, %v248
      %v299 = vsub.f32 %v243, %v249
      %v300 = vsub.f32 %v248, %v254
      %v301 = vsub.f32 %v249, %v255
      %v302 = vsub.f32 %v254, %v260
      %v303 = vsub.f32 %v255, %v261
      %v304 = vsub.f32 %v260, %v266
      %v305 = vsub.f32 %v261, %v267
      %v306 = vsub.f32 %v266, %v272
      %v307 = vsub.f32 %v267, %v273
      %v308 = vsub.f32 %v272, %v278
      %v309 = vsub.f32 %v273, %v279
      %v310 = vsub.f32 %v278, %v284
      %v311 = vsub.f32 %v279, %v285
      %v312 = vsub.f32 %v284, %v290
      %v313 = vsub.f32 %v285, %v291
      %v314 = vmul.f32 %v204, 2.5
      %v315 = vmul.f32 %v205, 2.5
      %v316 = vsub.f32 %v314, -5.5
      %v317 = vsub.f32 %v315, -5.5
      %v318 = vmul.f32 %v316, %v292
      %v319 = vmul.f32 %v317, %v293
      %v320 = vsub.f32 -3.5, %v314
      %v321 = vsub.f32 -3.5, %v315
      %v322 = vmul.f32 %v320, %v294
      %v323 = vmul.f32 %v321, %v295
      %v324 = vadd.f32 %v318, %v322
      %v325 = vadd.f32 %v319, %v323
      %v326 = vsub.f32 %v314, -4.5
      %v327 = vsub.f32 %v315, -4.5
      %v328 = vmul.f32 %v326, %v294
      %v329 = vmul.f32 %v327, %v295
      %v330 = vsub.f32 -2.5, %v314
      %v331 = vsub.f32 -2.5, %v315
      %v332 = vmul.f32 %v330, %v296
      %v333 = vmul.f32 %v331, %v297
      %v334 = vadd.f32 %v328, %v332
      %v335 = vadd.f32 %v329, %v333
      %v336 = vsub.f32 %v314, -3.5
      %v337 = vsub.f32 %v315, -3.5
      %v338 = vmul.f32 %v336, %v296
      %v339 = vmul.f32 %v337, %v297
      %v340 = vsub.f32 -1.5, %v314
      %v341 = vsub.f32 -1.5, %v315
      %v342 = vmul.f32 %v340, %v298
      %v343 = vmul.f32 %v341, %v299
      %v344 = vadd.f32 %v338, %v342
      %v345 = vadd.f32 %v339, %v343
      %v346 = vsub.f32 %v314, -2.5
      %v347 = vsub.f32 %v315, -2.5
      %v348 = vmul.f32 %v346, %v298
      %v349 = vmul.f32 %v347, %v299
      %v350 = vsub.f32 -0.5, %v314
      %v351 = vsub.f32 -0.5, %v315
      %v352 = vmul.f32 %v350, %v300
      %v353 = vmul.f32 %v351, %v301
      %v354 = vadd.f32 %v348, %v352
      %v355 = vadd.f32 %v349, %v353
      %v356 = vsub.f32 %v314, -1.5
      %v357 = vsub.f32 %v315, -1.5
      %v358 = vmul.f32 %v356, %v300
      %v359 = vmul.f32 %v357, %v301
      %v360 = vsub.f32 0.5, %v314
      %v361 = vsub.f32 0.5, %v315
      %v362 = vmul.f32 %v360, %v302
      %v363 = vmul.f32 %v361, %v303
      %v364 = vadd.f32 %v358, %v362
      %v365 = vadd.f32 %v359, %v363
      %v366 = vsub.f32 %v314, -0.5
      %v367 = vsub.f32 %v315, -0.5
      %v368 = vmul.f32 %v366, %v302
      %v369 = vmul.f32 %v367, %v303
      %v370 = vsub.f32 1.5, %v314
      %v371 = vsub.f32 1.5, %v315
      %v372 = vmul.f32 %v370, %v304
      %v373 = vmul.f32 %v371, %v305
      %v374 = vadd.f32 %v368, %v372
      %v375 = vadd.f32 %v369, %v373
      %v376 = vsub.f32 %v314, 0.5
      %v377 = vsub.f32 %v315, 0.5
      %v378 = vmul.f32 %v376, %v304
      %v379 = vmul.f32 %v377, %v305
      %v380 = vsub.f32 2.5, %v314
      %v381 = vsub.f32 2.5, %v315
      %v382 = vmul.f32 %v380, %v306
      %v383 = vmul.f32 %v381, %v307
      %v384 = vadd.f32 %v378, %v382
      %v385 = vadd.f32 %v379, %v383
      %v386 = vsub.f32 %v314, 1.5
      %v387 = vsub.f32 %v315, 1.5
      %v388 = vmul.f32 %v386, %v306
      %v389 = vmul.f32 %v387, %v307
      %v390 = vsub.f32 3.5, %v314
      %v391 = vsub.f32 3.5, %v315
      %v392 = vmul.f32 %v390, %v308
      %v393 = vmul.f32 %v391, %v309
      %v394 = vadd.f32 %v388, %v392
      %v395 = vadd.f32 %v389, %v393
      %v396 = vsub.f32 %v314, 2.5
      %v397 = vsub.f32 %v315, 2.5
      %v398 = vmul.f32 %v396, %v308
      %v399 = vmul.f32 %v397, %v309
      %v400 = vsub.f32 4.5, %v314
      %v401 = vsub.f32 4.5, %v315
      %v402 = vmul.f32 %v400, %v310
      %v403 = vmul.f32 %v401, %v311
      %v404 = vadd.f32 %v398, %v402
      %v405 = vadd.f32 %v399, %v403
      %v406 = vsub.f32 %v314, 3.5
      %v407 = vsub.f32 %v315, 3.5
      %v408 = vmul.f32 %v406, %v310
      %v409 = vmul.f32 %v407, %v311
      %v410 = vsub.f32 5.5, %v314
      %v411 = vsub.f32 5.5, %v315
      %v412 = vmul.f32 %v410, %v312
      %v413 = vmul.f32 %v411, %v313
      %v414 = vadd.f32 %v408, %v412
      %v415 = vadd.f32 %v409, %v413
      %v416 = vmul.f32 %v204, 1.25
      %v417 = vmul.f32 %v205, 1.25
      %v418 = vsub.f32 %v416, -2.75
      %v419 = vsub.f32 %v417, -2.75
      %v420 = vmul.f32 %v418, %v324
      %v421 = vmul.f32 %v419, %v325
      %v422 = vsub.f32 -1.25, %v416
      %v423 = vsub.f32 -1.25, %v417
      %v424 = vmul.f32 %v422, %v334
      %v425 = vmul.f32 %v423, %v335
      %v426 = vadd.f32 %v420, %v424
      %v427 = vadd.f32 %v421, %v425
      %v428 = vsub.f32 %v416, -2.25
      %v429 = vsub.f32 %v417, -2.25
      %v430 = vmul.f32 %v428, %v334
      %v431 = vmul.f32 %v429, %v335
      %v432 = vsub.f32 -0.75, %v416
      %v433 = vsub.f32 -0.75, %v417
      %v434 = vmul.f32 %v432, %v344
      %v435 = vmul.f32 %v433, %v345
      %v436 = vadd.f32 %v430, %v434
      %v437 = vadd.f32 %v431, %v435
      %v438 = vsub.f32 %v416, -1.75
      %v439 = vsub.f32 %v417, -1.75
      %v440 = vmul.f32 %v438, %v344
      %v441 = vmul.f32 %v439, %v345
      %v442 = vsub.f32 -0.25, %v416
      %v443 = vsub.f32 -0.25, %v417
      %v444 = vmul.f32 %v442, %v354
      %v445 = vmul.f32 %v443, %v355
      %v446 = vadd.f32 %v440, %v444
      %v447 = vadd.f32 %v441, %v445
      %v448 = vsub.f32 %v416, -1.25
      %v449 = vsub.f32 %v417, -1.25
      %v450 = vmul.f32 %v448, %v354
      %v451 = vmul.f32 %v449, %v355
      %v452 = vsub.f32 0.25, %v416
      %v453 = vsub.f32 0.25, %v417
      %v454 = vmul.f32 %v452, %v364
      %v455 = vmul.f32 %v453, %v365
      %v456 = vadd.f32 %v450, %v454
      %v457 = vadd.f32 %v451, %v455
      %v458 = vsub.f32 %v416, -0.75
      %v459 = vsub.f32 %v417, -0.75
      %v460 = vmul.f32 %v458, %v364
      %v461 = vmul.f32 %v459, %v365
      %v462 = vsub.f32 0.75, %v416
      %v463 = vsub.f32 0.75, %v417
      %v464 = vmul.f32 %v462, %v374
      %v465 = vmul.f32 %v463, %v375
      %v466 = vadd.f32 %v460, %v464
      %v467 = vadd.f32 %v461, %v465
      %v468 = vsub.f32 %v416, -0.25
      %v469 = vsub.f32 %v417, -0.25
      %v470 = vmul.f32 %v468, %v374
      %v471 = vmul.f32 %v469, %v375
      %v472 = vsub.f32 1.25, %v416
      %v473 = vsub.f32 1.25, %v417
      %v474 = vmul.f32 %v472, %v384
      %v475 = vmul.f32 %v473, %v385
      %v476 = vadd.f32 %v470, %v474
      %v477 = vadd.f32 %v471, %v475
      %v478 = vsub.f32 %v416, 0.25
      %v479 = vsub.f32 %v417, 0.25
      %v480 = vmul.f32 %v478, %v384
      %v481 = vmul.f32 %v479, %v385
      %v482 = vsub.f32 1.75, %v416
      %v483 = vsub.f32 1.75, %v417
      %v484 = vmul.f32 %v482, %v394
      %v485 = vmul.f32 %v483, %v395
      %v486 = vadd.f32 %v480, %v484
      %v487 = vadd.f32 %v481, %v485
      %v488 = vsub.f32 %v416, 0.75
      %v489 = vsub.f32 %v417, 0.75
      %v490 = vmul.f32 %v488, %v394
      %v491 = vmul.f32 %v489, %v395
      %v492 = vsub.f32 2.25, %v416
      %v493 = vsub.f32 2.25, %v417
      %v494 = vmul.f32 %v492, %v404
      %v495 = vmul.f32 %v493, %v405
      %v496 = vadd.f32 %v490, %v494
      %v497 = vadd.f32 %v491, %v495
      %v498 = vsub.f32 %v416, 1.25
      %v499 = vsub.f32 %v417, 1.25
      %v500 = vmul.f32 %v498, %v404
      %v501 = vmul.f32 %v499, %v405
      %v502 = vsub.f32 2.75, %v416
      %v503 = vsub.f32 2.75, %v417
      %v504 = vmul.f32 %v502, %v414
      %v505 = vmul.f32 %v503, %v415
      %v506 = vadd.f32 %v500, %v504
      %v507 = vadd.f32 %v501, %v505
      %v508 = vmul.f32 %v204, 0.8333333
      %v509 = vmul.f32 %v205, 0.8333333
      %v510 = vsub.f32 %v508, -1.8333334
      %v511 = vsub.f32 %v509, -1.8333334
      %v512 = vmul.f32 %v510, %v426
      %v513 = vmul.f32 %v511, %v427
      %v514 = vsub.f32 -0.5, %v508
      %v515 = vsub.f32 -0.5, %v509
      %v516 = vmul.f32 %v514, %v436
      %v517 = vmul.f32 %v515, %v437
      %v518 = vadd.f32 %v512, %v516
      %v519 = vadd.f32 %v513, %v517
      %v520 = vsub.f32 %v508, -1.5
      %v521 = vsub.f32 %v509, -1.5
      %v522 = vmul.f32 %v520, %v436
      %v523 = vmul.f32 %v521, %v437
      %v524 = vsub.f32 -0.16666667, %v508
      %v525 = vsub.f32 -0.16666667, %v509
      %v526 = vmul.f32 %v524, %v446
      %v527 = vmul.f32 %v525, %v447
      %v528 = vadd.f32 %v522, %v526
      %v529 = vadd.f32 %v523, %v527
      %v530 = vsub.f32 %v508, -1.1666666
      %v531 = vsub.f32 %v509, -1.1666666
      %v532 = vmul.f32 %v530, %v446
      %v533 = vmul.f32 %v531, %v447
      %v534 = vsub.f32 0.16666667, %v508
      %v535 = vsub.f32 0.16666667, %v509
      %v536 = vmul.f32 %v534, %v456
      %v537 = vmul.f32 %v535, %v457
      %v538 = vadd.f32 %v532, %v536
      %v539 = vadd.f32 %v533, %v537
      %v540 = vsub.f32 %v508, -0.8333333
      %v541 = vsub.f32 %v509, -0.8333333
      %v542 = vmul.f32 %v540, %v456
      %v543 = vmul.f32 %v541, %v457
      %v544 = vsub.f32 0.5, %v508
      %v545 = vsub.f32 0.5, %v509
      %v546 = vmul.f32 %v544, %v466
      %v547 = vmul.f32 %v545, %v467
      %v548 = vadd.f32 %v542, %v546
      %v549 = vadd.f32 %v543, %v547
      %v550 = vsub.f32 %v508, -0.5
      %v551 = vsub.f32 %v509, -0.5
      %v552 = vmul.f32 %v550, %v466
      %v553 = vmul.f32 %v551, %v467
      %v554 = vsub.f32 0.8333333, %v508
      %v555 = vsub.f32 0.8333333, %v509
      %v556 = vmul.f32 %v554, %v476
      %v557 = vmul.f32 %v555, %v477
      %v558 = vadd.f32 %v552, %v556
      %v559 = vadd.f32 %v553, %v557
      %v560 = vsub.f32 %v508, -0.16666667
      %v561 = vsub.f32 %v509, -0.16666667
      %v562 = vmul.f32 %v560, %v476
      %v563 = vmul.f32 %v561, %v477
      %v564 = vsub.f32 1.1666666, %v508
      %v565 = vsub.f32 1.1666666, %v509
      %v566 = vmul.f32 %v564, %v486
      %v567 = vmul.f32 %v565, %v487
      %v568 = vadd.f32 %v562, %v566
      %v569 = vadd.f32 %v563, %v567
      %v570 = vsub.f32 %v508, 0.16666667
      %v571 = vsub.f32 %v509, 0.16666667
      %v572 = vmul.f32 %v570, %v486
      %v573 = vmul.f32 %v571, %v487
      %v574 = vsub.f32 1.5, %v508
      %v575 = vsub.f32 1.5, %v509
      %v576 = vmul.f32 %v574, %v496
      %v577 = vmul.f32 %v575, %v497
      %v578 = vadd.f32 %v572, %v576
      %v579 = vadd.f32 %v573, %v577
      %v580 = vsub.f32 %v508, 0.5
      %v581 = vsub.f32 %v509, 0.5
      %v582 = vmul.f32 %v580, %v496
      %v583 = vmul.f32 %v581, %v497
      %v584 = vsub.f32 1.8333334, %v508
      %v585 = vsub.f32 1.8333334, %v509
      %v586 = vmul.f32 %v584, %v506
      %v587 = vmul.f32 %v585, %v507
      %v588 = vadd.f32 %v582, %v586
      %v589 = vadd.f32 %v583, %v587
      %v590 = vld [vmem:[%s1] sm:$0xff]
      %v591 = vld [vmem:[%s1 + $0x8] sm:$0xff]
      %v592 = vld [vmem:[%s1 + $0x10] sm:$0xff]
      %v593 = vld [vmem:[%s1 + $0x18] sm:$0xff]
      %v594 = vld [vmem:[%s1 + $0x20] sm:$0xff]
      %v595 = vld [vmem:[%s1 + $0x28] sm:$0xff]
      %v596 = vld [vmem:[%s1 + $0x30] sm:$0xff]
      %v597 = vld [vmem:[%s1 + $0x38] sm:$0xff]
      %v598 = vld [vmem:[%s1 + $0x40] sm:$0xff]
      %v599 = vld [vmem:[%s1 + $0x48] sm:$0xff]
      %v600 = vld [vmem:[%s1 + $0x50] sm:$0xff]
      %v601 = vld [vmem:[%s1 + $0x58] sm:$0xff]
      %v602 = vld [vmem:[%s1 + $0x60] sm:$0xff]
      %v603 = vld [vmem:[%s1 + $0x68] sm:$0xff]
      %v604 = vld [vmem:[%s1 + $0x70] sm:$0xff]
      %v605 = vld [vmem:[%s1 + $0x78] sm:$0xff]
      %v606 = vld [vmem:[%s1 + $0x80] sm:$0xff]
      %v607 = vld [vmem:[%s1 + $0x88] sm:$0xff]
      %v608 = vld [vmem:[%s1 + $0x90] sm:$0xff]
      %v609 = vld [vmem:[%s1 + $0x98] sm:$0xff]
      %v610 = vld [vmem:[%s1 + $0xa0] sm:$0xff]
      %v611 = vld [vmem:[%s1 + $0xa8] sm:$0xff]
      %v612 = vld [vmem:[%s1 + $0xb0] sm:$0xff]
      %v613 = vld [vmem:[%s1 + $0xb8] sm:$0xff]
      %v614 = vld [vmem:[%s1 + $0xc0] sm:$0xff]
      %v615 = vld [vmem:[%s1 + $0xc8] sm:$0xff]
      %v616 = vld [vmem:[%s1 + $0xd0] sm:$0xff]
      %618 = vset.pattern.permute.xlu0 0
      %619 = vperm.xlu0 %618, %v590
      %v620 = vpop.permute.xlu0 %619
      %v622 = vmul.f32 %v218, %v620
      %624 = vset.pattern.permute.xlu0 0
      %625 = vperm.xlu0 %624, %v593
      %v626 = vpop.permute.xlu0 %625
      %v628 = vmul.f32 %v518, %v626
      %v629 = vadd.f32 %v622, %v628
      %631 = vset.pattern.permute.xlu0 0
      %632 = vperm.xlu0 %631, %v596
      %v633 = vpop.permute.xlu0 %632
      %v635 = vmul.f32 %v528, %v633
      %v636 = vadd.f32 %v629, %v635
      %638 = vset.pattern.permute.xlu0 0
      %639 = vperm.xlu0 %638, %v599
      %v640 = vpop.permute.xlu0 %639
      %v642 = vmul.f32 %v538, %v640
      %v643 = vadd.f32 %v636, %v642
      %645 = vset.pattern.permute.xlu0 0
      %646 = vperm.xlu0 %645, %v602
      %v647 = vpop.permute.xlu0 %646
      %v649 = vmul.f32 %v548, %v647
      %v650 = vadd.f32 %v643, %v649
      %652 = vset.pattern.permute.xlu0 0
      %653 = vperm.xlu0 %652, %v605
      %v654 = vpop.permute.xlu0 %653
      %v656 = vmul.f32 %v558, %v654
      %v657 = vadd.f32 %v650, %v656
      %659 = vset.pattern.permute.xlu0 0
      %660 = vperm.xlu0 %659, %v608
      %v661 = vpop.permute.xlu0 %660
      %v663 = vmul.f32 %v568, %v661
      %v664 = vadd.f32 %v657, %v663
      %666 = vset.pattern.permute.xlu0 0
      %667 = vperm.xlu0 %666, %v611
      %v668 = vpop.permute.xlu0 %667
      %v670 = vmul.f32 %v578, %v668
      %v671 = vadd.f32 %v664, %v670
      %673 = vset.pattern.permute.xlu0 0
      %674 = vperm.xlu0 %673, %v614
      %v675 = vpop.permute.xlu0 %674
      %v677 = vmul.f32 %v588, %v675
      %v678 = vadd.f32 %v671, %v677
      %680 = vset.pattern.permute.xlu0 0
      %681 = vperm.xlu0 %680, %v591
      %v682 = vpop.permute.xlu0 %681
      %v684 = vmul.f32 %v218, %v682
      %v685 = vmul.f32 %v219, %v682
      %687 = vset.pattern.permute.xlu0 0
      %688 = vperm.xlu0 %687, %v594
      %v689 = vpop.permute.xlu0 %688
      %v691 = vmul.f32 %v518, %v689
      %v692 = vmul.f32 %v519, %v689
      %v693 = vadd.f32 %v684, %v691
      %v694 = vadd.f32 %v685, %v692
      %696 = vset.pattern.permute.xlu0 0
      %697 = vperm.xlu0 %696, %v597
      %v698 = vpop.permute.xlu0 %697
      %v700 = vmul.f32 %v528, %v698
      %v701 = vmul.f32 %v529, %v698
      %v702 = vadd.f32 %v693, %v700
      %v703 = vadd.f32 %v694, %v701
      %705 = vset.pattern.permute.xlu0 0
      %706 = vperm.xlu0 %705, %v600
      %v707 = vpop.permute.xlu0 %706
      %v709 = vmul.f32 %v538, %v707
      %v710 = vmul.f32 %v539, %v707
      %v711 = vadd.f32 %v702, %v709
      %v712 = vadd.f32 %v703, %v710
      %714 = vset.pattern.permute.xlu0 0
      %715 = vperm.xlu0 %714, %v603
      %v716 = vpop.permute.xlu0 %715
      %v718 = vmul.f32 %v548, %v716
      %v719 = vmul.f32 %v549, %v716
      %v720 = vadd.f32 %v711, %v718
      %v721 = vadd.f32 %v712, %v719
      %723 = vset.pattern.permute.xlu0 0
      %724 = vperm.xlu0 %723, %v606
      %v725 = vpop.permute.xlu0 %724
      %v727 = vmul.f32 %v558, %v725
      %v728 = vmul.f32 %v559, %v725
      %v729 = vadd.f32 %v720, %v727
      %v730 = vadd.f32 %v721, %v728
      %732 = vset.pattern.permute.xlu0 0
      %733 = vperm.xlu0 %732, %v609
      %v734 = vpop.permute.xlu0 %733
      %v736 = vmul.f32 %v568, %v734
      %v737 = vmul.f32 %v569, %v734
      %v738 = vadd.f32 %v729, %v736
      %v739 = vadd.f32 %v730, %v737
      %741 = vset.pattern.permute.xlu0 0
      %742 = vperm.xlu0 %741, %v612
      %v743 = vpop.permute.xlu0 %742
      %v745 = vmul.f32 %v578, %v743
      %v746 = vmul.f32 %v579, %v743
      %v747 = vadd.f32 %v738, %v745
      %v748 = vadd.f32 %v739, %v746
      %750 = vset.pattern.permute.xlu0 0
      %751 = vperm.xlu0 %750, %v615
      %v752 = vpop.permute.xlu0 %751
      %v754 = vmul.f32 %v588, %v752
      %v755 = vmul.f32 %v589, %v752
      %v756 = vadd.f32 %v747, %v754
      %v757 = vadd.f32 %v748, %v755
      %758 = vrot.lane.b32.xlu0 %v756, 127
      %v759 = vpop.permute.xlu0 %758
      %760 = vrot.lane.b32.xlu0 %v757, 127
      %v761 = vpop.permute.xlu0 %760
      %v762 = vlaneseq
      %v763 = vand.u32 %v762, 127
      %vm764 = vcmp.lt.s32.totalorder %v763, 127
      %v765 = vsel %vm764, %v759, %v761
      %v766 = vadd.f32 %v678, %v765
      %768 = vset.pattern.permute.xlu0 0
      %769 = vperm.xlu0 %768, %v592
      %v770 = vpop.permute.xlu0 %769
      %v772 = vmul.f32 %v218, %v770
      %v773 = vmul.f32 %v219, %v770
      %775 = vset.pattern.permute.xlu0 0
      %776 = vperm.xlu0 %775, %v595
      %v777 = vpop.permute.xlu0 %776
      %v779 = vmul.f32 %v518, %v777
      %v780 = vmul.f32 %v519, %v777
      %v781 = vadd.f32 %v772, %v779
      %v782 = vadd.f32 %v773, %v780
      %784 = vset.pattern.permute.xlu0 0
      %785 = vperm.xlu0 %784, %v598
      %v786 = vpop.permute.xlu0 %785
      %v788 = vmul.f32 %v528, %v786
      %v789 = vmul.f32 %v529, %v786
      %v790 = vadd.f32 %v781, %v788
      %v791 = vadd.f32 %v782, %v789
      %793 = vset.pattern.permute.xlu0 0
      %794 = vperm.xlu0 %793, %v601
      %v795 = vpop.permute.xlu0 %794
      %v797 = vmul.f32 %v538, %v795
      %v798 = vmul.f32 %v539, %v795
      %v799 = vadd.f32 %v790, %v797
      %v800 = vadd.f32 %v791, %v798
      %802 = vset.pattern.permute.xlu0 0
      %803 = vperm.xlu0 %802, %v604
      %v804 = vpop.permute.xlu0 %803
      %v806 = vmul.f32 %v548, %v804
      %v807 = vmul.f32 %v549, %v804
      %v808 = vadd.f32 %v799, %v806
      %v809 = vadd.f32 %v800, %v807
      %811 = vset.pattern.permute.xlu0 0
      %812 = vperm.xlu0 %811, %v607
      %v813 = vpop.permute.xlu0 %812
      %v815 = vmul.f32 %v558, %v813
      %v816 = vmul.f32 %v559, %v813
      %v817 = vadd.f32 %v808, %v815
      %v818 = vadd.f32 %v809, %v816
      %820 = vset.pattern.permute.xlu0 0
      %821 = vperm.xlu0 %820, %v610
      %v822 = vpop.permute.xlu0 %821
      %v824 = vmul.f32 %v568, %v822
      %v825 = vmul.f32 %v569, %v822
      %v826 = vadd.f32 %v817, %v824
      %v827 = vadd.f32 %v818, %v825
      %829 = vset.pattern.permute.xlu0 0
      %830 = vperm.xlu0 %829, %v613
      %v831 = vpop.permute.xlu0 %830
      %v833 = vmul.f32 %v578, %v831
      %v834 = vmul.f32 %v579, %v831
      %v835 = vadd.f32 %v826, %v833
      %v836 = vadd.f32 %v827, %v834
      %838 = vset.pattern.permute.xlu0 0
      %839 = vperm.xlu0 %838, %v616
      %v840 = vpop.permute.xlu0 %839
      %v842 = vmul.f32 %v588, %v840
      %v843 = vmul.f32 %v589, %v840
      %v844 = vadd.f32 %v835, %v842
      %v845 = vadd.f32 %v836, %v843
      %846 = vrot.lane.b32.xlu0 %v844, 126
      %v847 = vpop.permute.xlu0 %846
      %848 = vrot.lane.b32.xlu0 %v845, 126
      %v849 = vpop.permute.xlu0 %848
      %vm850 = vcmp.lt.s32.totalorder %v763, 126
      %v851 = vsel %vm850, %v847, %v849
      %v852 = vadd.f32 %v766, %v851
      %v853 = vxor.u32 %v852, 2147483648
      %v854 = vmul.f32 %v853, 1.442695
      %v855 = vpow.pop %v854
      %v856 = vadd.f32 %v855, 1.0
      %v857 = vrcp.pop %v856
      %v858 = vmul.f32 1.0, %v857
      %v859 = vmul.f32 %v852, %v858
      %vm860 = vcmp.ge.f32.partialorder %v852, -2.2
      %v861 = vsel %vm860, 1, 0
      %v862 = vcvt.s32.f32 %v861
      %vm863 = vcmp.ge.f32.partialorder %v852, -1.8
      %v864 = vsel %vm863, 1, 0
      %v865 = vcvt.s32.f32 %v864
      %vm866 = vcmp.ge.f32.partialorder %v852, -1.4
      %v867 = vsel %vm866, 1, 0
      %v868 = vcvt.s32.f32 %v867
      %vm869 = vcmp.ge.f32.partialorder %v852, -1.0
      %v870 = vsel %vm869, 1, 0
      %v871 = vcvt.s32.f32 %v870
      %vm872 = vcmp.ge.f32.partialorder %v852, -0.6
      %v873 = vsel %vm872, 1, 0
      %v874 = vcvt.s32.f32 %v873
      %vm875 = vcmp.ge.f32.partialorder %v852, -0.2
      %v876 = vsel %vm875, 1, 0
      %v877 = vcvt.s32.f32 %v876
      %vm878 = vcmp.ge.f32.partialorder %v852, 0.2
      %v879 = vsel %vm878, 1, 0
      %v880 = vcvt.s32.f32 %v879
      %vm881 = vcmp.ge.f32.partialorder %v852, 0.6
      %v882 = vsel %vm881, 1, 0
      %v883 = vcvt.s32.f32 %v882
      %vm884 = vcmp.ge.f32.partialorder %v852, 1.0
      %v885 = vsel %vm884, 1, 0
      %v886 = vcvt.s32.f32 %v885
      %vm887 = vcmp.ge.f32.partialorder %v852, 1.4
      %v888 = vsel %vm887, 1, 0
      %v889 = vcvt.s32.f32 %v888
      %vm890 = vcmp.ge.f32.partialorder %v852, 1.8
      %v891 = vsel %vm890, 1, 0
      %v892 = vcvt.s32.f32 %v891
      %vm893 = vcmp.ge.f32.partialorder %v852, 2.2
      %v894 = vsel %vm893, 1, 0
      %v895 = vcvt.s32.f32 %v894
      %v896 = vsub.f32 %v862, %v865
      %v897 = vsub.f32 %v865, %v868
      %v898 = vsub.f32 %v868, %v871
      %v899 = vsub.f32 %v871, %v874
      %v900 = vsub.f32 %v874, %v877
      %v901 = vsub.f32 %v877, %v880
      %v902 = vsub.f32 %v880, %v883
      %v903 = vsub.f32 %v883, %v886
      %v904 = vsub.f32 %v886, %v889
      %v905 = vsub.f32 %v889, %v892
      %v906 = vsub.f32 %v892, %v895
      %v907 = vmul.f32 %v852, 2.5
      %v908 = vsub.f32 %v907, -5.5
      %v909 = vmul.f32 %v908, %v896
      %v910 = vsub.f32 -3.5, %v907
      %v911 = vmul.f32 %v910, %v897
      %v912 = vadd.f32 %v909, %v911
      %v913 = vsub.f32 %v907, -4.5
      %v914 = vmul.f32 %v913, %v897
      %v915 = vsub.f32 -2.5, %v907
      %v916 = vmul.f32 %v915, %v898
      %v917 = vadd.f32 %v914, %v916
      %v918 = vsub.f32 %v907, -3.5
      %v919 = vmul.f32 %v918, %v898
      %v920 = vsub.f32 -1.5, %v907
      %v921 = vmul.f32 %v920, %v899
      %v922 = vadd.f32 %v919, %v921
      %v923 = vsub.f32 %v907, -2.5
      %v924 = vmul.f32 %v923, %v899
      %v925 = vsub.f32 -0.5, %v907
      %v926 = vmul.f32 %v925, %v900
      %v927 = vadd.f32 %v924, %v926
      %v928 = vsub.f32 %v907, -1.5
      %v929 = vmul.f32 %v928, %v900
      %v930 = vsub.f32 0.5, %v907
      %v931 = vmul.f32 %v930, %v901
      %v932 = vadd.f32 %v929, %v931
      %v933 = vsub.f32 %v907, -0.5
      %v934 = vmul.f32 %v933, %v901
      %v935 = vsub.f32 1.5, %v907
      %v936 = vmul.f32 %v935, %v902
      %v937 = vadd.f32 %v934, %v936
      %v938 = vsub.f32 %v907, 0.5
      %v939 = vmul.f32 %v938, %v902
      %v940 = vsub.f32 2.5, %v907
      %v941 = vmul.f32 %v940, %v903
      %v942 = vadd.f32 %v939, %v941
      %v943 = vsub.f32 %v907, 1.5
      %v944 = vmul.f32 %v943, %v903
      %v945 = vsub.f32 3.5, %v907
      %v946 = vmul.f32 %v945, %v904
      %v947 = vadd.f32 %v944, %v946
      %v948 = vsub.f32 %v907, 2.5
      %v949 = vmul.f32 %v948, %v904
      %v950 = vsub.f32 4.5, %v907
      %v951 = vmul.f32 %v950, %v905
      %v952 = vadd.f32 %v949, %v951
      %v953 = vsub.f32 %v907, 3.5
      %v954 = vmul.f32 %v953, %v905
      %v955 = vsub.f32 5.5, %v907
      %v956 = vmul.f32 %v955, %v906
      %v957 = vadd.f32 %v954, %v956
      %v958 = vmul.f32 %v852, 1.25
      %v959 = vsub.f32 %v958, -2.75
      %v960 = vmul.f32 %v959, %v912
      %v961 = vsub.f32 -1.25, %v958
      %v962 = vmul.f32 %v961, %v917
      %v963 = vadd.f32 %v960, %v962
      %v964 = vsub.f32 %v958, -2.25
      %v965 = vmul.f32 %v964, %v917
      %v966 = vsub.f32 -0.75, %v958
      %v967 = vmul.f32 %v966, %v922
      %v968 = vadd.f32 %v965, %v967
      %v969 = vsub.f32 %v958, -1.75
      %v970 = vmul.f32 %v969, %v922
      %v971 = vsub.f32 -0.25, %v958
      %v972 = vmul.f32 %v971, %v927
      %v973 = vadd.f32 %v970, %v972
      %v974 = vsub.f32 %v958, -1.25
      %v975 = vmul.f32 %v974, %v927
      %v976 = vsub.f32 0.25, %v958
      %v977 = vmul.f32 %v976, %v932
      %v978 = vadd.f32 %v975, %v977
      %v979 = vsub.f32 %v958, -0.75
      %v980 = vmul.f32 %v979, %v932
      %v981 = vsub.f32 0.75, %v958
      %v982 = vmul.f32 %v981, %v937
      %v983 = vadd.f32 %v980, %v982
      %v984 = vsub.f32 %v958, -0.25
      %v985 = vmul.f32 %v984, %v937
      %v986 = vsub.f32 1.25, %v958
      %v987 = vmul.f32 %v986, %v942
      %v988 = vadd.f32 %v985, %v987
      %v989 = vsub.f32 %v958, 0.25
      %v990 = vmul.f32 %v989, %v942
      %v991 = vsub.f32 1.75, %v958
      %v992 = vmul.f32 %v991, %v947
      %v993 = vadd.f32 %v990, %v992
      %v994 = vsub.f32 %v958, 0.75
      %v995 = vmul.f32 %v994, %v947
      %v996 = vsub.f32 2.25, %v958
      %v997 = vmul.f32 %v996, %v952
      %v998 = vadd.f32 %v995, %v997
      %v999 = vsub.f32 %v958, 1.25
      %v1000 = vmul.f32 %v999, %v952
      %v1001 = vsub.f32 2.75, %v958
      %v1002 = vmul.f32 %v1001, %v957
      %v1003 = vadd.f32 %v1000, %v1002
      %v1004 = vmul.f32 %v852, 0.8333333
      %v1005 = vsub.f32 %v1004, -1.8333334
      %v1006 = vmul.f32 %v1005, %v963
      %v1007 = vsub.f32 -0.5, %v1004
      %v1008 = vmul.f32 %v1007, %v968
      %v1009 = vadd.f32 %v1006, %v1008
      %v1010 = vsub.f32 %v1004, -1.5
      %v1011 = vmul.f32 %v1010, %v968
      %v1012 = vsub.f32 -0.16666667, %v1004
      %v1013 = vmul.f32 %v1012, %v973
      %v1014 = vadd.f32 %v1011, %v1013
      %v1015 = vsub.f32 %v1004, -1.1666666
      %v1016 = vmul.f32 %v1015, %v973
      %v1017 = vsub.f32 0.16666667, %v1004
      %v1018 = vmul.f32 %v1017, %v978
      %v1019 = vadd.f32 %v1016, %v1018
      %v1020 = vsub.f32 %v1004, -0.8333333
      %v1021 = vmul.f32 %v1020, %v978
      %v1022 = vsub.f32 0.5, %v1004
      %v1023 = vmul.f32 %v1022, %v983
      %v1024 = vadd.f32 %v1021, %v1023
      %v1025 = vsub.f32 %v1004, -0.5
      %v1026 = vmul.f32 %v1025, %v983
      %v1027 = vsub.f32 0.8333333, %v1004
      %v1028 = vmul.f32 %v1027, %v988
      %v1029 = vadd.f32 %v1026, %v1028
      %v1030 = vsub.f32 %v1004, -0.16666667
      %v1031 = vmul.f32 %v1030, %v988
      %v1032 = vsub.f32 1.1666666, %v1004
      %v1033 = vmul.f32 %v1032, %v993
      %v1034 = vadd.f32 %v1031, %v1033
      %v1035 = vsub.f32 %v1004, 0.16666667
      %v1036 = vmul.f32 %v1035, %v993
      %v1037 = vsub.f32 1.5, %v1004
      %v1038 = vmul.f32 %v1037, %v998
      %v1039 = vadd.f32 %v1036, %v1038
      %v1040 = vsub.f32 %v1004, 0.5
      %v1041 = vmul.f32 %v1040, %v998
      %v1042 = vsub.f32 1.8333334, %v1004
      %v1043 = vmul.f32 %v1042, %v1003
      %v1044 = vadd.f32 %v1041, %v1043
      %v1045 = vpack.c.bf16 %v1009, %v859
      %v1046 = vpack.c.bf16 %v1019, %v1014
      %v1047 = vpack.c.bf16 %v1029, %v1024
      %v1048 = vpack.c.bf16 %v1039, %v1034
      %v1049 = vpack.c.bf16 %v1044, %v1044
      %v1050 = vld [vmem:[%s2] sm:$0xf]
      %vm1051 = vcmask 588800
      %v1053 = vsel %vm1051, %v1050, 0
      %vm1055 = vcmask 1043456
      %v1057 = vsel %vm1055, %v1049, 0
      %1059 = vmatprep.subr.bf16.mxu0 0
      %1060 = vmatpush1.bf16.msra.mxu0 %v1045
      %1061 = vmatprep.subr.bf16.mxu0 0
      %1062 = vmatpush1.bf16.msra.mxu0 %v1046
      %1063 = vmatprep.subr.bf16.mxu0 0
      %1064 = vmatpush1.bf16.msra.mxu0 %v1047
      %1065 = vmatprep.subr.bf16.mxu0 0
      %1066 = vmatpush1.bf16.msra.mxu0 %v1048
      %1067 = vmatprep.subr.bf16.mxu0 0
      %1068 = vmatpush1.bf16.msra.mxu0 %v1057
      %1069 = vmatprep.subr.bf16.mxu0 0
      %1070 = vmatpush1.bf16.msra.mxu0 0
      %1071 = vmatprep.subr.bf16.mxu0 0
      %1072 = vmatpush1.bf16.msra.mxu0 0
      %1073 = vmatprep.subr.bf16.mxu0 0
      %1074 = vmatpush1.bf16.msra.mxu0 0
      %1075 = vmatprep.subr.bf16.mxu0 0
      %1076 = vmatpush1.bf16.msra.mxu0 0
      %1077 = vmatprep.subr.bf16.mxu0 0
      %1078 = vmatpush1.bf16.msra.mxu0 0
      %1079 = vmatprep.subr.bf16.mxu0 0
      %1080 = vmatpush1.bf16.msra.mxu0 0
      %1081 = vmatprep.subr.bf16.mxu0 0
      %1082 = vmatpush1.bf16.msra.mxu0 0
      %1083 = vmatprep.subr.bf16.mxu0 0
      %1084 = vmatpush1.bf16.msra.mxu0 0
      %1085 = vmatprep.subr.bf16.mxu0 0
      %1086 = vmatpush1.bf16.msra.mxu0 0
      %1087 = vmatprep.subr.bf16.mxu0 0
      %1088 = vmatpush1.bf16.msra.mxu0 0
      %1089 = vmatprep.subr.bf16.mxu0 0
      %1090 = vmatpush1.bf16.msra.mxu0 0
      %1091 = vmatprep.mubr.bf16.mxu0 0
      %1092 = vmatmul.mubr.bf16.gmra.mrb[0].mxu0 %v1053
      %v1093 = vpop.f32.mrb[0].mxu0
      %v1094 = vadd.f32 0.0, %v1093
      %v1095 = vpop.f32.mrb[0].mxu0
      %v1096 = vpop.f32.mrb[0].mxu0
      %v1097 = vpop.f32.mrb[0].mxu0
      %1098 = vdwg.mxu0
      %1099 = vst [vmem:[%s202] sm:$0xff] %v1094
      %p1100 = scmp.lt.s32.totalorder %s18, 1
      %s1101 = scalar_select %p1100, %s18, 1
      %p1102 = scmp.lt.s32.totalorder %s19, 0
      %s1103 = scalar_select %p1102, %s19, 0
      %s1104 = sadd.s32 %s1103, %s1101
      %s1105 = smul.addr %s1104, 8
      %s1106 = scalar_lea.vmem %s3, %s1105
      // Predicated region
      $region33: #{a_call__.2} parent=31 // pred_check
        %p1107 = pneg %p116
      $region34: #{a_call__.2} parent=31 // pred_check_branch
        %1109 = sbr.rel (%p1107) target = $region36
      $region35: #{a_call__.2} parent=31 // pred_region
        _
      $region36: #{a_call__.2} parent=31 // pred_fallthru
        _
    $region32: #{a_call__.2} parent=5 // pred_fallthru
      _
    %p1110 = scmp.le.s32.totalorder 2, %s9
    // Predicated region
    $region37: #{a_call__.2} parent=5 // pred_check
      %p1111 = pneg %p1110
    $region38: #{a_call__.2} parent=5 // pred_check_branch
      %1113 = sbr.rel (%p1111) target = $region40
    $region39: #{a_call__.2} parent=5 // pred_region
      %s1114 = ssub.s32 %s9, 2
      // Predicated region
      $region41: #{a_call__.2} parent=39 // pred_check
        %p1115 = pneg %p122
      $region42: #{a_call__.2} parent=39 // pred_check_branch
        %1117 = sbr.rel (%p1115) target = $region44
      $region43: #{a_call__.2} parent=39 // pred_region
        %p1118 = scmp.lt.s32.totalorder %s20, 1
        %s1119 = scalar_select %p1118, %s20, 1
        %p1120 = scmp.lt.s32.totalorder %s21, 0
        %s1121 = scalar_select %p1120, %s21, 0
        %s1122 = sadd.s32 %s1121, %s1119
        %s1123 = smul.addr %s1122, 8
        %s1124 = scalar_lea.vmem %s3, %s1123
      $region44: #{a_call__.2} parent=39 // pred_fallthru
        _
    $region40: #{a_call__.2} parent=5 // pred_fallthru
      _
  $region6: #{a_call__.2} parent=0 // loop_footer
    %s13 = sadd.s32 1, %s9
  $region7: #{a_call__.2} parent=0 // loop_footer_branch
    %8 = sbr.rel target = $region3
  $region8: #{a_call__.2} parent=0 // loop_exit
    _

</llo_original>
